<compile_context>
chip_gen: v7x
topology: tpu7x:2x2x1
jax: 0.10.0
libtpu: 0.0.40
codegen_flags: <defaults>
</compile_context>

<pallas_src>
import functools

import jax
import jax.numpy as jnp
from jax import lax
from jax.experimental import pallas as pl
from jax.experimental.pallas import tpu as pltpu


def _round_up(n, m):
    return ((n + m - 1) // m) * m


def _pick_tile(dim, candidates):
    for c in candidates:
        if dim % c == 0:
            return c
    return dim


def _vmem_capacity_bytes():
    """Physical VMEM per core; 64 MiB fallback is safe on all generations."""
    try:
        return int(pltpu.get_tpu_info().vmem_capacity_bytes)
    except Exception:
        return 64 * 1024 * 1024


def _vmem_limit(fp_bytes):
    # Leave headroom for compiler-internal scratch / double-buffering:
    # request at most ~85% of physical VMEM, at least 32 MiB.
    ceiling = int(_vmem_capacity_bytes() * 0.85)
    return int(min(max(2 * fp_bytes, 32 * 1024 * 1024), ceiling))


# ---------------------------------------------------------------------------
# LSTM kernel: grid over layers ("arbitrary"), weights streamed per layer.
#   x_ref:    (Sp, Inp)   f32  padded layer-0 input (resident, index (0,0))
#   h0/c0:    (1, Hp)     f32  this layer's initial state
#   w_ih_ref: (Inp, 4Hp)  bf16 this layer's pre-transposed input weights
#   w_hh_ref: (Hp, 4Hp)   bf16 this layer's pre-transposed recurrent weights
#   b_ref:    (1, 4Hp)    f32  b_ih + b_hh
# Outputs:
#   y_ref:    (Sp, Hp)    f32  last-layer hidden states (written on last layer)
#   hT/cT:    (1, Hp)     f32  this layer's final state
# Scratch (persists across grid steps):
#   x_scr:    (Sp, Inp)   f32  inter-layer activations
#   xg_scr:   (XGC, 4Hp)  f32  per-chunk hoisted input projection
# ---------------------------------------------------------------------------
def _lstm_layer_kernel(S, Sp, Hp, Inp, XGC, n_layers,
                       x_ref, h0_ref, c0_ref, w_ih_ref, w_hh_ref, b_ref,
                       y_ref, hT_ref, cT_ref,
                       x_scr, xg_scr):
    f32 = jnp.float32
    bf16 = jnp.bfloat16
    l = pl.program_id(0)
    col = slice(None) if Inp == Hp else pl.ds(0, Hp)

    # Layer 0: bring the (host-zero-padded) embedded input into the persistent
    # inter-layer activation buffer once; later layers read/write it in place.
    @pl.when(l == 0)
    def _():
        x_scr[...] = x_ref[...]

    w_ih = w_ih_ref[...]                 # (Inp, 4Hp) bf16, streamed per layer
    w_hh = w_hh_ref[...]                 # (Hp, 4Hp)  bf16
    bias = b_ref[...]                    # (1, 4Hp)   f32

    h = h0_ref[...]                      # (1, Hp) f32, carried in vregs
    c = c0_ref[...]

    def cell(h, c, xg_row):
        # Only the recurrent matmul sits on the serial dependence chain.
        gates = xg_row + jnp.dot(h.astype(bf16), w_hh,
                                 preferred_element_type=f32)      # (1, 4Hp)
        # PyTorch gate order i, f, g, o; i/f sigmoids merged (contiguous slice).
        if_g = jax.nn.sigmoid(gates[:, 0:2 * Hp])
        i_g = if_g[:, 0:Hp]
        f_g = if_g[:, Hp:2 * Hp]
        g_g = jnp.tanh(gates[:, 2 * Hp:3 * Hp])
        o_g = jax.nn.sigmoid(gates[:, 3 * Hp:4 * Hp])
        c_n = f_g * c + i_g * g_g
        h_n = o_g * jnp.tanh(c_n)
        return h_n, c_n

    n_chunks = Sp // XGC
    for ci in range(n_chunks):                         # static chunk loop
        steps = min(S - ci * XGC, XGC)
        if steps <= 0:
            break
        base = ci * XGC

        # Hoisted input projection for this chunk only (one big MXU matmul);
        # caps the projection scratch at (XGC, 4Hp).
        xg_scr[...] = (
            jnp.dot(x_scr[pl.ds(base, XGC), :].astype(bf16), w_ih,
                    preferred_element_type=f32)
            + bias
        )

        n_full = steps // 8
        rem = steps - n_full * 8

        def group_body(gi, carry, _base=base):
            h, c = carry
            off = pl.multiple_of(gi * 8, 8)
            row = pl.multiple_of(_base + gi * 8, 8)
            xg_blk = xg_scr[pl.ds(off, 8), :]          # dense (8, 4Hp) load
            rows = []
            for k in range(8):                         # unrolled timesteps
                h, c = cell(h, c, xg_blk[k:k + 1, :])
                rows.append(h)
            x_scr[pl.ds(row, 8), col] = jnp.concatenate(rows, axis=0)
            return (h, c)

        if n_full > 0:
            h, c = lax.fori_loop(0, n_full, group_body, (h, c))

        if rem > 0:                                    # static tail (< 8 steps)
            off = n_full * 8
            xg_blk = xg_scr[pl.ds(off, 8), :]
            rows = []
            for k in range(rem):
                h, c = cell(h, c, xg_blk[k:k + 1, :])
                rows.append(h)
            rows.extend([h] * (8 - rem))               # finite filler, no fresh zeros
            x_scr[pl.ds(base + off, 8), col] = jnp.concatenate(rows, axis=0)

    hT_ref[...] = h
    cT_ref[...] = c

    # Last layer: publish hidden states as the (resident) y output block.
    @pl.when(l == n_layers - 1)
    def _():
        y_ref[...] = x_scr[:, 0:Hp]


def lstm_stack(x, h0, c0, w_ih, w_hh, b, *, seq_len, xg_chunk):
    """Multi-layer LSTM: one pallas_call, grid over layers, weights streamed."""
    Sp, Inp = x.shape
    n_layers = h0.shape[0]
    four_hp = w_hh.shape[-1]
    Hp = four_hp // 4

    kernel = functools.partial(_lstm_layer_kernel, seq_len, Sp, Hp, Inp,
                               xg_chunk, n_layers)

    # Resident VMEM estimate: f32 activations (x, x_scr, y, xg chunk) +
    # double-buffered bf16 per-layer weights + small state blocks.
    fp_bytes = (4 * (2 * Sp * Inp + Sp * Hp + xg_chunk * four_hp + 8 * Hp)
                + 2 * 2 * (Inp * four_hp + Hp * four_hp)
                + 2 * 4 * four_hp)

    cost = pl.CostEstimate(
        flops=int(2 * seq_len * Inp * four_hp
                  + 2 * (n_layers - 1) * seq_len * Hp * four_hp
                  + 2 * n_layers * seq_len * Hp * four_hp
                  + 10 * n_layers * seq_len * Hp),
        transcendentals=int(5 * n_layers * seq_len * Hp),
        bytes_accessed=int(4 * (Sp * Inp + Sp * Hp + 4 * n_layers * Hp)
                           + 2 * n_layers * (Inp + Hp) * four_hp
                           + 4 * n_layers * four_hp))

    grid_spec = pltpu.PrefetchScalarGridSpec(
        num_scalar_prefetch=0,
        grid=(n_layers,),
        in_specs=[
            pl.BlockSpec((Sp, Inp), lambda l: (0, 0)),                       # x (resident)
            pl.BlockSpec((pl.Squeezed(), 1, Hp), lambda l: (l, 0, 0)),       # h0[l]
            pl.BlockSpec((pl.Squeezed(), 1, Hp), lambda l: (l, 0, 0)),       # c0[l]
            pl.BlockSpec((pl.Squeezed(), Inp, four_hp), lambda l: (l, 0, 0)),  # w_ih[l]
            pl.BlockSpec((pl.Squeezed(), Hp, four_hp), lambda l: (l, 0, 0)),   # w_hh[l]
            pl.BlockSpec((pl.Squeezed(), 1, four_hp), lambda l: (l, 0, 0)),    # b[l]
        ],
        out_specs=(
            pl.BlockSpec((Sp, Hp), lambda l: (0, 0)),                        # y (resident)
            pl.BlockSpec((pl.Squeezed(), 1, Hp), lambda l: (l, 0, 0)),       # hT[l]
            pl.BlockSpec((pl.Squeezed(), 1, Hp), lambda l: (l, 0, 0)),       # cT[l]
        ),
        scratch_shapes=[
            pltpu.VMEM((Sp, Inp), jnp.float32),          # inter-layer activations
            pltpu.VMEM((xg_chunk, four_hp), jnp.float32),  # per-chunk projection
        ])

    return pl.pallas_call(
        kernel,
        out_shape=(
            jax.ShapeDtypeStruct((Sp, Hp), jnp.float32),
            jax.ShapeDtypeStruct((n_layers, 1, Hp), jnp.float32),
            jax.ShapeDtypeStruct((n_layers, 1, Hp), jnp.float32),
        ),
        grid_spec=grid_spec,
        compiler_params=pltpu.CompilerParams(
            dimension_semantics=("arbitrary",),
            vmem_limit_bytes=_vmem_limit(fp_bytes)),
        cost_estimate=cost,
    )(x, h0, c0, w_ih, w_hh, b)


# ---------------------------------------------------------------------------
# Tiled Linear output layer: out = x @ W^T + b.
# Grid is (V tiles, S tiles) so the dominant (Hp, TN) weight tile stays
# resident across all sequence tiles (weight changes only on the outer axis).
# ---------------------------------------------------------------------------
def _linear_kernel(x_ref, w_ref, b_ref, o_ref):
    o_ref[...] = (
        jnp.dot(x_ref[...].astype(jnp.bfloat16), w_ref[...],
                preferred_element_type=jnp.float32)
        + b_ref[...]
    ).astype(o_ref.dtype)


def linear(x, w_t, b):
    Sp, Hp = x.shape
    Vp = w_t.shape[-1]
    big_vmem = _vmem_capacity_bytes() >= 100 * 1024 * 1024   # v5e/v6e 128 MiB parts
    tn_cands = (2048, 1024, 512, 256, 128) if big_vmem else (512, 256, 128)
    TM = Sp if Sp <= 512 else _pick_tile(Sp, (512, 256, 128, 64, 32, 16, 8))
    TN = _pick_tile(Vp, tn_cands)
    grid = (Vp // TN, Sp // TM)          # vocab outer, sequence inner

    fp_bytes = 2 * (4 * TM * Hp + 2 * Hp * TN + 4 * TN + 4 * TM * TN)
    cost = pl.CostEstimate(
        flops=int(2 * Sp * Hp * Vp), transcendentals=0,
        bytes_accessed=int(4 * Sp * Hp + 2 * Hp * Vp + 4 * Vp + 4 * Sp * Vp))

    return pl.pallas_call(
        _linear_kernel,
        out_shape=jax.ShapeDtypeStruct((Sp, Vp), jnp.float32),
        grid=grid,
        in_specs=[
            pl.BlockSpec((TM, Hp), lambda j, i: (i, 0)),
            pl.BlockSpec((Hp, TN), lambda j, i: (0, j)),   # depends on outer axis only
            pl.BlockSpec((1, TN), lambda j, i: (0, j)),
        ],
        out_specs=pl.BlockSpec((TM, TN), lambda j, i: (i, j)),
        compiler_params=pltpu.CompilerParams(
            dimension_semantics=("parallel", "parallel"),
            vmem_limit_bytes=_vmem_limit(fp_bytes)),
        cost_estimate=cost,
    )(x, w_t, b)


# ---------------------------------------------------------------------------
# Parameter init (PyTorch layout) + conversion to padded/stacked kernel layout.
# ---------------------------------------------------------------------------
def init_params(key, vocab_size, embedding_dim, hidden_size, n_layers):
    keys = jax.random.split(key, 3 + 4 * n_layers)
    scale = 0.1
    params = {"embedding": scale * jax.random.normal(
        keys[0], (vocab_size, embedding_dim), jnp.float32)}
    w_ih, w_hh, b_ih, b_hh = [], [], [], []
    for l in range(n_layers):
        in_dim = embedding_dim if l == 0 else hidden_size
        k0, k1, k2, k3 = keys[1 + 4 * l: 5 + 4 * l]
        w_ih.append(scale * jax.random.normal(k0, (4 * hidden_size, in_dim), jnp.float32))
        w_hh.append(scale * jax.random.normal(k1, (4 * hidden_size, hidden_size), jnp.float32))
        b_ih.append(scale * jax.random.normal(k2, (4 * hidden_size,), jnp.float32))
        b_hh.append(scale * jax.random.normal(k3, (4 * hidden_size,), jnp.float32))
    params.update(weight_ih=w_ih, weight_hh=w_hh, bias_ih=b_ih, bias_hh=b_hh)
    params["lin_w"] = scale * jax.random.normal(keys[-2], (vocab_size, hidden_size), jnp.float32)
    params["lin_b"] = scale * jax.random.normal(keys[-1], (vocab_size,), jnp.float32)
    return params


def prepare_kernel_params(params, vocab_size, embedding_dim, hidden_size, n_layers):
    """Pre-transpose, per-gate zero-pad to 128 lanes, stack layers, cast to bf16."""
    H, E, V = hidden_size, embedding_dim, vocab_size
    Hp = _round_up(H, 128)
    Ep = _round_up(E, 128)
    Inp = max(Ep, Hp)
    Vp = _round_up(V, 128)

    w_ih_l, w_hh_l, b_l = [], [], []
    for l in range(n_layers):
        in_dim = E if l == 0 else H
        w_ih = params["weight_ih"][l]                        # (4H, in_dim), gates i,f,g,o
        w_hh = params["weight_hh"][l]                        # (4H, H)
        bias = params["bias_ih"][l] + params["bias_hh"][l]   # (4H,)

        t = jnp.transpose(w_ih.reshape(4, H, in_dim), (2, 0, 1))   # (in_dim, 4, H)
        t = jnp.pad(t, ((0, Inp - in_dim), (0, 0), (0, Hp - H)))
        w_ih_l.append(t.reshape(Inp, 4 * Hp))

        t = jnp.transpose(w_hh.reshape(4, H, H), (2, 0, 1))        # (H, 4, H)
        t = jnp.pad(t, ((0, Hp - H), (0, 0), (0, Hp - H)))
        w_hh_l.append(t.reshape(Hp, 4 * Hp))

        t = jnp.pad(bias.reshape(4, H), ((0, 0), (0, Hp - H)))
        b_l.append(t.reshape(1, 4 * Hp))

    return {
        "embedding": params["embedding"],
        "w_ih": jnp.stack(w_ih_l).astype(jnp.bfloat16),     # (L, Inp, 4Hp) bf16
        "w_hh": jnp.stack(w_hh_l).astype(jnp.bfloat16),     # (L, Hp, 4Hp)  bf16
        "b": jnp.stack(b_l),                                 # (L, 1, 4Hp)   f32
        "lin_w_t": jnp.pad(params["lin_w"].T,
                           ((0, Hp - H), (0, Vp - V))).astype(jnp.bfloat16),  # (Hp, Vp)
        "lin_b": jnp.pad(params["lin_b"], (0, Vp - V)).reshape(1, Vp),
        "dims": dict(H=H, Hp=Hp, E=E, Inp=Inp, V=V, Vp=Vp, n_layers=n_layers),
    }


# ---------------------------------------------------------------------------
# Decoder forward (matches PyTorch Decoder.forward semantics, eval mode).
# ---------------------------------------------------------------------------
def decoder_forward(kp, seq, hidden_states):
    d = kp["dims"]
    H, Hp, Inp, V, E = d["H"], d["Hp"], d["Inp"], d["V"], d["E"]
    h0, c0 = hidden_states                                    # each (L, H)

    # (i) embedding lookup (glue gather); (ii) dropout: eval-mode identity.
    x = jnp.take(kp["embedding"], seq, axis=0)                # (S, E)
    S = x.shape[0]

    # Sequence padding / projection chunk size (caps xg scratch at 256 rows).
    if S <= 256:
        Sp = _round_up(S, 8)
        xgc = Sp
    else:
        Sp = _round_up(S, 256)
        xgc = 256

    x_p = jnp.pad(x, ((0, Sp - S), (0, Inp - E)))
    h0_p = jnp.pad(h0, ((0, 0), (0, Hp - H)))[:, None, :]     # (L, 1, Hp)
    c0_p = jnp.pad(c0, ((0, 0), (0, Hp - H)))[:, None, :]

    # (iii) multi-layer LSTM (single pallas_call, layers streamed over the grid)
    y_p, hT_p, cT_p = lstm_stack(x_p, h0_p, c0_p,
                                 kp["w_ih"], kp["w_hh"], kp["b"],
                                 seq_len=S, xg_chunk=xgc)

    # (iv) tiled linear output layer
    logits_p = linear(y_p, kp["lin_w_t"], kp["lin_b"])        # (Sp, Vp)
    out = logits_p[:S, :V]
    return out, (hT_p[:, 0, :H], cT_p[:, 0, :H])


# ---------------------------------------------------------------------------
# Pure-JAX reference (unpadded, f32) for a sanity check.
# ---------------------------------------------------------------------------
def reference_forward(params, seq, hidden_states):
    h, c = hidden_states
    H = h.shape[-1]
    x = jnp.take(params["embedding"], seq, axis=0)
    ys = x
    h_fin, c_fin = [], []
    for l in range(h.shape[0]):
        w_ih, w_hh = params["weight_ih"][l], params["weight_hh"][l]
        b = params["bias_ih"][l] + params["bias_hh"][l]
        hs, cs = h[l], c[l]
        outs = []
        for t in range(ys.shape[0]):
            g = ys[t] @ w_ih.T + hs @ w_hh.T + b
            i_g = jax.nn.sigmoid(g[0 * H:1 * H]); f_g = jax.nn.sigmoid(g[1 * H:2 * H])
            g_g = jnp.tanh(g[2 * H:3 * H]); o_g = jax.nn.sigmoid(g[3 * H:4 * H])
            cs = f_g * cs + i_g * g_g
            hs = o_g * jnp.tanh(cs)
            outs.append(hs)
        ys = jnp.stack(outs)
        h_fin.append(hs); c_fin.append(cs)
    out = ys @ params["lin_w"].T + params["lin_b"]
    return out, (jnp.stack(h_fin), jnp.stack(c_fin))


if __name__ == "__main__":
    vocab_size = 32
    config = dict(embedding_dim=16, hidden_size=32, n_layers=2, dropout=0.0)
    seq_len = 8

    key = jax.random.PRNGKey(0)
    k_params, k_seq, k_h, k_c = jax.random.split(key, 4)

    params = init_params(k_params, vocab_size, config["embedding_dim"],
                         config["hidden_size"], config["n_layers"])
    kparams = prepare_kernel_params(params, vocab_size, config["embedding_dim"],
                                    config["hidden_size"], config["n_layers"])

    seq = jax.random.randint(k_seq, (seq_len,), 0, vocab_size, dtype=jnp.int32)
    h0 = jax.random.normal(k_h, (config["n_layers"], config["hidden_size"]), jnp.float32)
    c0 = jax.random.normal(k_c, (config["n_layers"], config["hidden_size"]), jnp.float32)

    out, (hT, cT) = decoder_forward(kparams, seq, (h0, c0))
    jax.block_until_ready((out, hT, cT))

    assert out.shape == (seq_len, vocab_size)
    assert hT.shape == (config["n_layers"], config["hidden_size"])
    assert cT.shape == (config["n_layers"], config["hidden_size"])

    out_ref, (hT_ref, cT_ref) = reference_forward(params, seq, (h0, c0))
    assert bool(jnp.allclose(out, out_ref, atol=5e-2, rtol=5e-2))
    assert bool(jnp.allclose(hT, hT_ref, atol=5e-2, rtol=5e-2))
    assert bool(jnp.allclose(cT, cT_ref, atol=5e-2, rtol=5e-2))

    print("KERNEL_OK")
</pallas_src>

<mosaic_0001>
module attributes {stable_mosaic.version = 11 : i64} {
  func.func @_lstm_layer_kernel(%arg0: i32, %arg1: memref<8x128xf32, #tpu.memory_space<vmem>>, %arg2: memref<1x1x128xf32, #tpu.memory_space<vmem>>, %arg3: memref<1x1x128xf32, #tpu.memory_space<vmem>>, %arg4: memref<1x128x512xbf16, #tpu.memory_space<vmem>>, %arg5: memref<1x128x512xbf16, #tpu.memory_space<vmem>>, %arg6: memref<1x1x512xf32, #tpu.memory_space<vmem>>, %arg7: memref<8x128xf32, #tpu.memory_space<vmem>>, %arg8: memref<1x1x128xf32, #tpu.memory_space<vmem>>, %arg9: memref<1x1x128xf32, #tpu.memory_space<vmem>>, %arg10: memref<8x128xf32, #tpu.memory_space<vmem>>, %arg11: memref<8x512xf32, #tpu.memory_space<vmem>>) attributes {dimension_semantics = [#tpu.dimension_semantics<arbitrary>], iteration_bounds = array<i64: 2>, scalar_prefetch = 0 : i64, scratch_operands = 2 : i64, tpu.core_type = #tpu.core_type<tc>, window_params = [{pipeline_mode = #tpu.pipeline_mode<synchronous>, transform_indices = @transform_0, window_bounds = array<i64: 8, 128>}, {transform_indices = @transform_1, window_bounds = array<i64: 1, 1, 128>}, {transform_indices = @transform_2, window_bounds = array<i64: 1, 1, 128>}, {transform_indices = @transform_3, window_bounds = array<i64: 1, 128, 512>}, {transform_indices = @transform_4, window_bounds = array<i64: 1, 128, 512>}, {transform_indices = @transform_5, window_bounds = array<i64: 1, 1, 512>}, {pipeline_mode = #tpu.pipeline_mode<synchronous>, transform_indices = @transform_6, window_bounds = array<i64: 8, 128>}, {transform_indices = @transform_7, window_bounds = array<i64: 1, 1, 128>}, {transform_indices = @transform_8, window_bounds = array<i64: 1, 1, 128>}]} {
    %c0_i32 = arith.constant 0 : i32
    %0 = arith.cmpi eq, %arg0, %c0_i32 : i32
    %1 = arith.extui %0 : i1 to i32
    %c0_i32_0 = arith.constant 0 : i32
    %2 = arith.cmpi ne, %1, %c0_i32_0 : i32
    scf.if %2 {
      %c0_56 = arith.constant 0 : index
      %c0_57 = arith.constant 0 : index
      %238 = vector.load %arg1[%c0_56, %c0_57] : memref<8x128xf32, #tpu.memory_space<vmem>>, vector<8x128xf32>
      %c0_58 = arith.constant 0 : index
      %c0_59 = arith.constant 0 : index
      %239 = vector.load %arg10[%c0_58, %c0_59] : memref<8x128xf32, #tpu.memory_space<vmem>>, vector<8x128xf32>
      tpu.vector_store %arg10[%c0_58, %c0_59], %238 {strides = array<i32>} : memref<8x128xf32, #tpu.memory_space<vmem>>, vector<8x128xf32>,
    } else {
    }
    %c0 = arith.constant 0 : index
    %c0_1 = arith.constant 0 : index
    %c0_2 = arith.constant 0 : index
    %3 = vector.load %arg4[%c0, %c0_1, %c0_2] : memref<1x128x512xbf16, #tpu.memory_space<vmem>>, vector<1x128x512xbf16>
    %4 = vector.shape_cast %3 : vector<1x128x512xbf16> to vector<128x512xbf16>
    %c0_3 = arith.constant 0 : index
    %c0_4 = arith.constant 0 : index
    %c0_5 = arith.constant 0 : index
    %5 = vector.load %arg5[%c0_3, %c0_4, %c0_5] : memref<1x128x512xbf16, #tpu.memory_space<vmem>>, vector<1x128x512xbf16>
    %6 = vector.shape_cast %5 : vector<1x128x512xbf16> to vector<128x512xbf16>
    %c0_6 = arith.constant 0 : index
    %c0_7 = arith.constant 0 : index
    %c0_8 = arith.constant 0 : index
    %7 = vector.load %arg6[%c0_6, %c0_7, %c0_8] : memref<1x1x512xf32, #tpu.memory_space<vmem>>, vector<1x1x512xf32>
    %8 = vector.shape_cast %7 : vector<1x1x512xf32> to vector<1x512xf32>
    %c0_9 = arith.constant 0 : index
    %c0_10 = arith.constant 0 : index
    %c0_11 = arith.constant 0 : index
    %9 = vector.load %arg2[%c0_9, %c0_10, %c0_11] : memref<1x1x128xf32, #tpu.memory_space<vmem>>, vector<1x1x128xf32>
    %10 = vector.shape_cast %9 : vector<1x1x128xf32> to vector<1x128xf32>
    %c0_12 = arith.constant 0 : index
    %c0_13 = arith.constant 0 : index
    %c0_14 = arith.constant 0 : index
    %11 = vector.load %arg3[%c0_12, %c0_13, %c0_14] : memref<1x1x128xf32, #tpu.memory_space<vmem>>, vector<1x1x128xf32>
    %12 = vector.shape_cast %11 : vector<1x1x128xf32> to vector<1x128xf32>
    %c0_15 = arith.constant 0 : index
    %c0_16 = arith.constant 0 : index
    %13 = vector.load %arg10[%c0_15, %c0_16] : memref<8x128xf32, #tpu.memory_space<vmem>>, vector<8x128xf32>
    %14 = arith.truncf %13 : vector<8x128xf32> to vector<8x128xbf16>
    %cst = arith.constant dense<0.000000e+00> : vector<8x512xf32>
    %15 = tpu.matmul %14, %4, %cst {dimension_numbers = #tpu.dot_dimension_numbers<[1], [0], [0], [1], [0, 0, 1, 1], [], []>} : vector<8x128xbf16>, vector<128x512xbf16>, vector<8x512xf32> -> vector<8x512xf32>
    %16 = vector.broadcast %8 : vector<1x512xf32> to vector<8x512xf32>
    %17 = arith.addf %15, %16 : vector<8x512xf32>
    %c0_17 = arith.constant 0 : index
    %c0_18 = arith.constant 0 : index
    %18 = vector.load %arg11[%c0_17, %c0_18] : memref<8x512xf32, #tpu.memory_space<vmem>>, vector<8x512xf32>
    tpu.vector_store %arg11[%c0_17, %c0_18], %17 {strides = array<i32>} : memref<8x512xf32, #tpu.memory_space<vmem>>, vector<8x512xf32>,
    %c0_i32_19 = arith.constant 0 : i32
    %c8_i32 = arith.constant 8 : i32
    %19 = arith.muli %c0_i32_19, %c8_i32 : i32
    %20 = tpu.assume_multiple %19, 8 : i32
    %c8_i32_20 = arith.constant 8 : i32
    %21 = arith.muli %c0_i32_19, %c8_i32_20 : i32
    %c0_i32_21 = arith.constant 0 : i32
    %22 = arith.addi %c0_i32_21, %21 : i32
    %23 = tpu.assume_multiple %22, 8 : i32
    %24 = arith.index_cast %20 : i32 to index
    %c0_22 = arith.constant 0 : index
    %25 = vector.load %arg11[%24, %c0_22] : memref<8x512xf32, #tpu.memory_space<vmem>>, vector<8x512xf32>
    %26 = vector.extract_strided_slice %25 {offsets = [0, 0], sizes = [1, 512], strides = [1, 1]} : vector<8x512xf32> to vector<1x512xf32>
    %27 = arith.truncf %10 : vector<1x128xf32> to vector<1x128xbf16>
    %cst_23 = arith.constant dense<0.000000e+00> : vector<1x512xf32>
    %28 = tpu.matmul %27, %6, %cst_23 {dimension_numbers = #tpu.dot_dimension_numbers<[1], [0], [0], [1], [0, 0, 1, 1], [], []>} : vector<1x128xbf16>, vector<128x512xbf16>, vector<1x512xf32> -> vector<1x512xf32>
    %29 = arith.addf %26, %28 : vector<1x512xf32>
    %30 = vector.extract_strided_slice %29 {offsets = [0, 0], sizes = [1, 256], strides = [1, 1]} : vector<1x512xf32> to vector<1x256xf32>
    %31 = arith.negf %30 : vector<1x256xf32>
    %32 = math.exp %31 : vector<1x256xf32>
    %cst_24 = arith.constant 1.000000e+00 : f32
    %33 = vector.broadcast %cst_24 : f32 to vector<1x256xf32>
    %34 = arith.addf %33, %32 : vector<1x256xf32>
    %35 = arith.divf %33, %34 : vector<1x256xf32>
    %36 = vector.extract_strided_slice %35 {offsets = [0, 0], sizes = [1, 128], strides = [1, 1]} : vector<1x256xf32> to vector<1x128xf32>
    %37 = vector.extract_strided_slice %35 {offsets = [0, 128], sizes = [1, 128], strides = [1, 1]} : vector<1x256xf32> to vector<1x128xf32>
    %38 = vector.extract_strided_slice %29 {offsets = [0, 256], sizes = [1, 128], strides = [1, 1]} : vector<1x512xf32> to vector<1x128xf32>
    %39 = math.tanh %38 : vector<1x128xf32>
    %40 = vector.extract_strided_slice %29 {offsets = [0, 384], sizes = [1, 128], strides = [1, 1]} : vector<1x512xf32> to vector<1x128xf32>
    %41 = arith.negf %40 : vector<1x128xf32>
    %42 = math.exp %41 : vector<1x128xf32>
    %cst_25 = arith.constant 1.000000e+00 : f32
    %43 = vector.broadcast %cst_25 : f32 to vector<1x128xf32>
    %44 = arith.addf %43, %42 : vector<1x128xf32>
    %45 = arith.divf %43, %44 : vector<1x128xf32>
    %46 = arith.mulf %37, %12 : vector<1x128xf32>
    %47 = arith.mulf %36, %39 : vector<1x128xf32>
    %48 = arith.addf %46, %47 : vector<1x128xf32>
    %49 = math.tanh %48 : vector<1x128xf32>
    %50 = arith.mulf %45, %49 : vector<1x128xf32>
    %51 = vector.extract_strided_slice %25 {offsets = [1, 0], sizes = [1, 512], strides = [1, 1]} : vector<8x512xf32> to vector<1x512xf32>
    %52 = arith.truncf %50 : vector<1x128xf32> to vector<1x128xbf16>
    %cst_26 = arith.constant dense<0.000000e+00> : vector<1x512xf32>
    %53 = tpu.matmul %52, %6, %cst_26 {dimension_numbers = #tpu.dot_dimension_numbers<[1], [0], [0], [1], [0, 0, 1, 1], [], []>} : vector<1x128xbf16>, vector<128x512xbf16>, vector<1x512xf32> -> vector<1x512xf32>
    %54 = arith.addf %51, %53 : vector<1x512xf32>
    %55 = vector.extract_strided_slice %54 {offsets = [0, 0], sizes = [1, 256], strides = [1, 1]} : vector<1x512xf32> to vector<1x256xf32>
    %56 = arith.negf %55 : vector<1x256xf32>
    %57 = math.exp %56 : vector<1x256xf32>
    %cst_27 = arith.constant 1.000000e+00 : f32
    %58 = vector.broadcast %cst_27 : f32 to vector<1x256xf32>
    %59 = arith.addf %58, %57 : vector<1x256xf32>
    %60 = arith.divf %58, %59 : vector<1x256xf32>
    %61 = vector.extract_strided_slice %60 {offsets = [0, 0], sizes = [1, 128], strides = [1, 1]} : vector<1x256xf32> to vector<1x128xf32>
    %62 = vector.extract_strided_slice %60 {offsets = [0, 128], sizes = [1, 128], strides = [1, 1]} : vector<1x256xf32> to vector<1x128xf32>
    %63 = vector.extract_strided_slice %54 {offsets = [0, 256], sizes = [1, 128], strides = [1, 1]} : vector<1x512xf32> to vector<1x128xf32>
    %64 = math.tanh %63 : vector<1x128xf32>
    %65 = vector.extract_strided_slice %54 {offsets = [0, 384], sizes = [1, 128], strides = [1, 1]} : vector<1x512xf32> to vector<1x128xf32>
    %66 = arith.negf %65 : vector<1x128xf32>
    %67 = math.exp %66 : vector<1x128xf32>
    %cst_28 = arith.constant 1.000000e+00 : f32
    %68 = vector.broadcast %cst_28 : f32 to vector<1x128xf32>
    %69 = arith.addf %68, %67 : vector<1x128xf32>
    %70 = arith.divf %68, %69 : vector<1x128xf32>
    %71 = arith.mulf %62, %48 : vector<1x128xf32>
    %72 = arith.mulf %61, %64 : vector<1x128xf32>
    %73 = arith.addf %71, %72 : vector<1x128xf32>
    %74 = math.tanh %73 : vector<1x128xf32>
    %75 = arith.mulf %70, %74 : vector<1x128xf32>
    %76 = vector.extract_strided_slice %25 {offsets = [2, 0], sizes = [1, 512], strides = [1, 1]} : vector<8x512xf32> to vector<1x512xf32>
    %77 = arith.truncf %75 : vector<1x128xf32> to vector<1x128xbf16>
    %cst_29 = arith.constant dense<0.000000e+00> : vector<1x512xf32>
    %78 = tpu.matmul %77, %6, %cst_29 {dimension_numbers = #tpu.dot_dimension_numbers<[1], [0], [0], [1], [0, 0, 1, 1], [], []>} : vector<1x128xbf16>, vector<128x512xbf16>, vector<1x512xf32> -> vector<1x512xf32>
    %79 = arith.addf %76, %78 : vector<1x512xf32>
    %80 = vector.extract_strided_slice %79 {offsets = [0, 0], sizes = [1, 256], strides = [1, 1]} : vector<1x512xf32> to vector<1x256xf32>
    %81 = arith.negf %80 : vector<1x256xf32>
    %82 = math.exp %81 : vector<1x256xf32>
    %cst_30 = arith.constant 1.000000e+00 : f32
    %83 = vector.broadcast %cst_30 : f32 to vector<1x256xf32>
    %84 = arith.addf %83, %82 : vector<1x256xf32>
    %85 = arith.divf %83, %84 : vector<1x256xf32>
    %86 = vector.extract_strided_slice %85 {offsets = [0, 0], sizes = [1, 128], strides = [1, 1]} : vector<1x256xf32> to vector<1x128xf32>
    %87 = vector.extract_strided_slice %85 {offsets = [0, 128], sizes = [1, 128], strides = [1, 1]} : vector<1x256xf32> to vector<1x128xf32>
    %88 = vector.extract_strided_slice %79 {offsets = [0, 256], sizes = [1, 128], strides = [1, 1]} : vector<1x512xf32> to vector<1x128xf32>
    %89 = math.tanh %88 : vector<1x128xf32>
    %90 = vector.extract_strided_slice %79 {offsets = [0, 384], sizes = [1, 128], strides = [1, 1]} : vector<1x512xf32> to vector<1x128xf32>
    %91 = arith.negf %90 : vector<1x128xf32>
    %92 = math.exp %91 : vector<1x128xf32>
    %cst_31 = arith.constant 1.000000e+00 : f32
    %93 = vector.broadcast %cst_31 : f32 to vector<1x128xf32>
    %94 = arith.addf %93, %92 : vector<1x128xf32>
    %95 = arith.divf %93, %94 : vector<1x128xf32>
    %96 = arith.mulf %87, %73 : vector<1x128xf32>
    %97 = arith.mulf %86, %89 : vector<1x128xf32>
    %98 = arith.addf %96, %97 : vector<1x128xf32>
    %99 = math.tanh %98 : vector<1x128xf32>
    %100 = arith.mulf %95, %99 : vector<1x128xf32>
    %101 = vector.extract_strided_slice %25 {offsets = [3, 0], sizes = [1, 512], strides = [1, 1]} : vector<8x512xf32> to vector<1x512xf32>
    %102 = arith.truncf %100 : vector<1x128xf32> to vector<1x128xbf16>
    %cst_32 = arith.constant dense<0.000000e+00> : vector<1x512xf32>
    %103 = tpu.matmul %102, %6, %cst_32 {dimension_numbers = #tpu.dot_dimension_numbers<[1], [0], [0], [1], [0, 0, 1, 1], [], []>} : vector<1x128xbf16>, vector<128x512xbf16>, vector<1x512xf32> -> vector<1x512xf32>
    %104 = arith.addf %101, %103 : vector<1x512xf32>
    %105 = vector.extract_strided_slice %104 {offsets = [0, 0], sizes = [1, 256], strides = [1, 1]} : vector<1x512xf32> to vector<1x256xf32>
    %106 = arith.negf %105 : vector<1x256xf32>
    %107 = math.exp %106 : vector<1x256xf32>
    %cst_33 = arith.constant 1.000000e+00 : f32
    %108 = vector.broadcast %cst_33 : f32 to vector<1x256xf32>
    %109 = arith.addf %108, %107 : vector<1x256xf32>
    %110 = arith.divf %108, %109 : vector<1x256xf32>
    %111 = vector.extract_strided_slice %110 {offsets = [0, 0], sizes = [1, 128], strides = [1, 1]} : vector<1x256xf32> to vector<1x128xf32>
    %112 = vector.extract_strided_slice %110 {offsets = [0, 128], sizes = [1, 128], strides = [1, 1]} : vector<1x256xf32> to vector<1x128xf32>
    %113 = vector.extract_strided_slice %104 {offsets = [0, 256], sizes = [1, 128], strides = [1, 1]} : vector<1x512xf32> to vector<1x128xf32>
    %114 = math.tanh %113 : vector<1x128xf32>
    %115 = vector.extract_strided_slice %104 {offsets = [0, 384], sizes = [1, 128], strides = [1, 1]} : vector<1x512xf32> to vector<1x128xf32>
    %116 = arith.negf %115 : vector<1x128xf32>
    %117 = math.exp %116 : vector<1x128xf32>
    %cst_34 = arith.constant 1.000000e+00 : f32
    %118 = vector.broadcast %cst_34 : f32 to vector<1x128xf32>
    %119 = arith.addf %118, %117 : vector<1x128xf32>
    %120 = arith.divf %118, %119 : vector<1x128xf32>
    %121 = arith.mulf %112, %98 : vector<1x128xf32>
    %122 = arith.mulf %111, %114 : vector<1x128xf32>
    %123 = arith.addf %121, %122 : vector<1x128xf32>
    %124 = math.tanh %123 : vector<1x128xf32>
    %125 = arith.mulf %120, %124 : vector<1x128xf32>
    %126 = vector.extract_strided_slice %25 {offsets = [4, 0], sizes = [1, 512], strides = [1, 1]} : vector<8x512xf32> to vector<1x512xf32>
    %127 = arith.truncf %125 : vector<1x128xf32> to vector<1x128xbf16>
    %cst_35 = arith.constant dense<0.000000e+00> : vector<1x512xf32>
    %128 = tpu.matmul %127, %6, %cst_35 {dimension_numbers = #tpu.dot_dimension_numbers<[1], [0], [0], [1], [0, 0, 1, 1], [], []>} : vector<1x128xbf16>, vector<128x512xbf16>, vector<1x512xf32> -> vector<1x512xf32>
    %129 = arith.addf %126, %128 : vector<1x512xf32>
    %130 = vector.extract_strided_slice %129 {offsets = [0, 0], sizes = [1, 256], strides = [1, 1]} : vector<1x512xf32> to vector<1x256xf32>
    %131 = arith.negf %130 : vector<1x256xf32>
    %132 = math.exp %131 : vector<1x256xf32>
    %cst_36 = arith.constant 1.000000e+00 : f32
    %133 = vector.broadcast %cst_36 : f32 to vector<1x256xf32>
    %134 = arith.addf %133, %132 : vector<1x256xf32>
    %135 = arith.divf %133, %134 : vector<1x256xf32>
    %136 = vector.extract_strided_slice %135 {offsets = [0, 0], sizes = [1, 128], strides = [1, 1]} : vector<1x256xf32> to vector<1x128xf32>
    %137 = vector.extract_strided_slice %135 {offsets = [0, 128], sizes = [1, 128], strides = [1, 1]} : vector<1x256xf32> to vector<1x128xf32>
    %138 = vector.extract_strided_slice %129 {offsets = [0, 256], sizes = [1, 128], strides = [1, 1]} : vector<1x512xf32> to vector<1x128xf32>
    %139 = math.tanh %138 : vector<1x128xf32>
    %140 = vector.extract_strided_slice %129 {offsets = [0, 384], sizes = [1, 128], strides = [1, 1]} : vector<1x512xf32> to vector<1x128xf32>
    %141 = arith.negf %140 : vector<1x128xf32>
    %142 = math.exp %141 : vector<1x128xf32>
    %cst_37 = arith.constant 1.000000e+00 : f32
    %143 = vector.broadcast %cst_37 : f32 to vector<1x128xf32>
    %144 = arith.addf %143, %142 : vector<1x128xf32>
    %145 = arith.divf %143, %144 : vector<1x128xf32>
    %146 = arith.mulf %137, %123 : vector<1x128xf32>
    %147 = arith.mulf %136, %139 : vector<1x128xf32>
    %148 = arith.addf %146, %147 : vector<1x128xf32>
    %149 = math.tanh %148 : vector<1x128xf32>
    %150 = arith.mulf %145, %149 : vector<1x128xf32>
    %151 = vector.extract_strided_slice %25 {offsets = [5, 0], sizes = [1, 512], strides = [1, 1]} : vector<8x512xf32> to vector<1x512xf32>
    %152 = arith.truncf %150 : vector<1x128xf32> to vector<1x128xbf16>
    %cst_38 = arith.constant dense<0.000000e+00> : vector<1x512xf32>
    %153 = tpu.matmul %152, %6, %cst_38 {dimension_numbers = #tpu.dot_dimension_numbers<[1], [0], [0], [1], [0, 0, 1, 1], [], []>} : vector<1x128xbf16>, vector<128x512xbf16>, vector<1x512xf32> -> vector<1x512xf32>
    %154 = arith.addf %151, %153 : vector<1x512xf32>
    %155 = vector.extract_strided_slice %154 {offsets = [0, 0], sizes = [1, 256], strides = [1, 1]} : vector<1x512xf32> to vector<1x256xf32>
    %156 = arith.negf %155 : vector<1x256xf32>
    %157 = math.exp %156 : vector<1x256xf32>
    %cst_39 = arith.constant 1.000000e+00 : f32
    %158 = vector.broadcast %cst_39 : f32 to vector<1x256xf32>
    %159 = arith.addf %158, %157 : vector<1x256xf32>
    %160 = arith.divf %158, %159 : vector<1x256xf32>
    %161 = vector.extract_strided_slice %160 {offsets = [0, 0], sizes = [1, 128], strides = [1, 1]} : vector<1x256xf32> to vector<1x128xf32>
    %162 = vector.extract_strided_slice %160 {offsets = [0, 128], sizes = [1, 128], strides = [1, 1]} : vector<1x256xf32> to vector<1x128xf32>
    %163 = vector.extract_strided_slice %154 {offsets = [0, 256], sizes = [1, 128], strides = [1, 1]} : vector<1x512xf32> to vector<1x128xf32>
    %164 = math.tanh %163 : vector<1x128xf32>
    %165 = vector.extract_strided_slice %154 {offsets = [0, 384], sizes = [1, 128], strides = [1, 1]} : vector<1x512xf32> to vector<1x128xf32>
    %166 = arith.negf %165 : vector<1x128xf32>
    %167 = math.exp %166 : vector<1x128xf32>
    %cst_40 = arith.constant 1.000000e+00 : f32
    %168 = vector.broadcast %cst_40 : f32 to vector<1x128xf32>
    %169 = arith.addf %168, %167 : vector<1x128xf32>
    %170 = arith.divf %168, %169 : vector<1x128xf32>
    %171 = arith.mulf %162, %148 : vector<1x128xf32>
    %172 = arith.mulf %161, %164 : vector<1x128xf32>
    %173 = arith.addf %171, %172 : vector<1x128xf32>
    %174 = math.tanh %173 : vector<1x128xf32>
    %175 = arith.mulf %170, %174 : vector<1x128xf32>
    %176 = vector.extract_strided_slice %25 {offsets = [6, 0], sizes = [1, 512], strides = [1, 1]} : vector<8x512xf32> to vector<1x512xf32>
    %177 = arith.truncf %175 : vector<1x128xf32> to vector<1x128xbf16>
    %cst_41 = arith.constant dense<0.000000e+00> : vector<1x512xf32>
    %178 = tpu.matmul %177, %6, %cst_41 {dimension_numbers = #tpu.dot_dimension_numbers<[1], [0], [0], [1], [0, 0, 1, 1], [], []>} : vector<1x128xbf16>, vector<128x512xbf16>, vector<1x512xf32> -> vector<1x512xf32>
    %179 = arith.addf %176, %178 : vector<1x512xf32>
    %180 = vector.extract_strided_slice %179 {offsets = [0, 0], sizes = [1, 256], strides = [1, 1]} : vector<1x512xf32> to vector<1x256xf32>
    %181 = arith.negf %180 : vector<1x256xf32>
    %182 = math.exp %181 : vector<1x256xf32>
    %cst_42 = arith.constant 1.000000e+00 : f32
    %183 = vector.broadcast %cst_42 : f32 to vector<1x256xf32>
    %184 = arith.addf %183, %182 : vector<1x256xf32>
    %185 = arith.divf %183, %184 : vector<1x256xf32>
    %186 = vector.extract_strided_slice %185 {offsets = [0, 0], sizes = [1, 128], strides = [1, 1]} : vector<1x256xf32> to vector<1x128xf32>
    %187 = vector.extract_strided_slice %185 {offsets = [0, 128], sizes = [1, 128], strides = [1, 1]} : vector<1x256xf32> to vector<1x128xf32>
    %188 = vector.extract_strided_slice %179 {offsets = [0, 256], sizes = [1, 128], strides = [1, 1]} : vector<1x512xf32> to vector<1x128xf32>
    %189 = math.tanh %188 : vector<1x128xf32>
    %190 = vector.extract_strided_slice %179 {offsets = [0, 384], sizes = [1, 128], strides = [1, 1]} : vector<1x512xf32> to vector<1x128xf32>
    %191 = arith.negf %190 : vector<1x128xf32>
    %192 = math.exp %191 : vector<1x128xf32>
    %cst_43 = arith.constant 1.000000e+00 : f32
    %193 = vector.broadcast %cst_43 : f32 to vector<1x128xf32>
    %194 = arith.addf %193, %192 : vector<1x128xf32>
    %195 = arith.divf %193, %194 : vector<1x128xf32>
    %196 = arith.mulf %187, %173 : vector<1x128xf32>
    %197 = arith.mulf %186, %189 : vector<1x128xf32>
    %198 = arith.addf %196, %197 : vector<1x128xf32>
    %199 = math.tanh %198 : vector<1x128xf32>
    %200 = arith.mulf %195, %199 : vector<1x128xf32>
    %201 = vector.extract_strided_slice %25 {offsets = [7, 0], sizes = [1, 512], strides = [1, 1]} : vector<8x512xf32> to vector<1x512xf32>
    %202 = arith.truncf %200 : vector<1x128xf32> to vector<1x128xbf16>
    %cst_44 = arith.constant dense<0.000000e+00> : vector<1x512xf32>
    %203 = tpu.matmul %202, %6, %cst_44 {dimension_numbers = #tpu.dot_dimension_numbers<[1], [0], [0], [1], [0, 0, 1, 1], [], []>} : vector<1x128xbf16>, vector<128x512xbf16>, vector<1x512xf32> -> vector<1x512xf32>
    %204 = arith.addf %201, %203 : vector<1x512xf32>
    %205 = vector.extract_strided_slice %204 {offsets = [0, 0], sizes = [1, 256], strides = [1, 1]} : vector<1x512xf32> to vector<1x256xf32>
    %206 = arith.negf %205 : vector<1x256xf32>
    %207 = math.exp %206 : vector<1x256xf32>
    %cst_45 = arith.constant 1.000000e+00 : f32
    %208 = vector.broadcast %cst_45 : f32 to vector<1x256xf32>
    %209 = arith.addf %208, %207 : vector<1x256xf32>
    %210 = arith.divf %208, %209 : vector<1x256xf32>
    %211 = vector.extract_strided_slice %210 {offsets = [0, 0], sizes = [1, 128], strides = [1, 1]} : vector<1x256xf32> to vector<1x128xf32>
    %212 = vector.extract_strided_slice %210 {offsets = [0, 128], sizes = [1, 128], strides = [1, 1]} : vector<1x256xf32> to vector<1x128xf32>
    %213 = vector.extract_strided_slice %204 {offsets = [0, 256], sizes = [1, 128], strides = [1, 1]} : vector<1x512xf32> to vector<1x128xf32>
    %214 = math.tanh %213 : vector<1x128xf32>
    %215 = vector.extract_strided_slice %204 {offsets = [0, 384], sizes = [1, 128], strides = [1, 1]} : vector<1x512xf32> to vector<1x128xf32>
    %216 = arith.negf %215 : vector<1x128xf32>
    %217 = math.exp %216 : vector<1x128xf32>
    %cst_46 = arith.constant 1.000000e+00 : f32
    %218 = vector.broadcast %cst_46 : f32 to vector<1x128xf32>
    %219 = arith.addf %218, %217 : vector<1x128xf32>
    %220 = arith.divf %218, %219 : vector<1x128xf32>
    %221 = arith.mulf %212, %198 : vector<1x128xf32>
    %222 = arith.mulf %211, %214 : vector<1x128xf32>
    %223 = arith.addf %221, %222 : vector<1x128xf32>
    %224 = math.tanh %223 : vector<1x128xf32>
    %225 = arith.mulf %220, %224 : vector<1x128xf32>
    %226 = tpu.concatenate %50, %75, %100, %125, %150, %175, %200, %225 in 0 : vector<1x128xf32>, vector<1x128xf32>, vector<1x128xf32>, vector<1x128xf32>, vector<1x128xf32>, vector<1x128xf32>, vector<1x128xf32>, vector<1x128xf32> -> vector<8x128xf32>
    %227 = arith.index_cast %23 : i32 to index
    %c0_47 = arith.constant 0 : index
    %228 = vector.load %arg10[%227, %c0_47] : memref<8x128xf32, #tpu.memory_space<vmem>>, vector<8x128xf32>
    tpu.vector_store %arg10[%227, %c0_47], %226 {strides = array<i32>} : memref<8x128xf32, #tpu.memory_space<vmem>>, vector<8x128xf32>,
    %c1_i32 = arith.constant 1 : i32
    %c0_48 = arith.constant 0 : index
    %c0_49 = arith.constant 0 : index
    %c0_50 = arith.constant 0 : index
    %229 = vector.load %arg8[%c0_48, %c0_49, %c0_50] : memref<1x1x128xf32, #tpu.memory_space<vmem>>, vector<1x1x128xf32>
    %230 = vector.shape_cast %229 : vector<1x1x128xf32> to vector<1x128xf32>
    %231 = vector.shape_cast %225 : vector<1x128xf32> to vector<1x1x128xf32>
    tpu.vector_store %arg8[%c0_48, %c0_49, %c0_50], %231 {strides = array<i32>} : memref<1x1x128xf32, #tpu.memory_space<vmem>>, vector<1x1x128xf32>,
    %c0_51 = arith.constant 0 : index
    %c0_52 = arith.constant 0 : index
    %c0_53 = arith.constant 0 : index
    %232 = vector.load %arg9[%c0_51, %c0_52, %c0_53] : memref<1x1x128xf32, #tpu.memory_space<vmem>>, vector<1x1x128xf32>
    %233 = vector.shape_cast %232 : vector<1x1x128xf32> to vector<1x128xf32>
    %234 = vector.shape_cast %223 : vector<1x128xf32> to vector<1x1x128xf32>
    tpu.vector_store %arg9[%c0_51, %c0_52, %c0_53], %234 {strides = array<i32>} : memref<1x1x128xf32, #tpu.memory_space<vmem>>, vector<1x1x128xf32>,
    %c1_i32_54 = arith.constant 1 : i32
    %235 = arith.cmpi eq, %arg0, %c1_i32_54 : i32
    %236 = arith.extui %235 : i1 to i32
    %c0_i32_55 = arith.constant 0 : i32
    %237 = arith.cmpi ne, %236, %c0_i32_55 : i32
    scf.if %237 {
      %c0_56 = arith.constant 0 : index
      %c0_57 = arith.constant 0 : index
      %238 = vector.load %arg10[%c0_56, %c0_57] : memref<8x128xf32, #tpu.memory_space<vmem>>, vector<8x128xf32>
      %c0_58 = arith.constant 0 : index
      %c0_59 = arith.constant 0 : index
      %239 = vector.load %arg7[%c0_58, %c0_59] : memref<8x128xf32, #tpu.memory_space<vmem>>, vector<8x128xf32>
      tpu.vector_store %arg7[%c0_58, %c0_59], %238 {strides = array<i32>} : memref<8x128xf32, #tpu.memory_space<vmem>>, vector<8x128xf32>,
    } else {
    }
    return
  }
  func.func @transform_0(%arg0: i32) -> (i32, i32) {
    %c0_i32 = arith.constant 0 : i32
    %c0_i32_0 = arith.constant 0 : i32
    %c0_i32_1 = arith.constant 0 : i32
    return %c0_i32, %c0_i32_0 : i32, i32
  }
  func.func @transform_1(%arg0: i32) -> (i32, i32, i32) {
    %c0_i32 = arith.constant 0 : i32
    %c0_i32_0 = arith.constant 0 : i32
    %c0_i32_1 = arith.constant 0 : i32
    return %arg0, %c0_i32, %c0_i32_0 : i32, i32, i32
  }
  func.func @transform_2(%arg0: i32) -> (i32, i32, i32) {
    %c0_i32 = arith.constant 0 : i32
    %c0_i32_0 = arith.constant 0 : i32
    %c0_i32_1 = arith.constant 0 : i32
    return %arg0, %c0_i32, %c0_i32_0 : i32, i32, i32
  }
  func.func @transform_3(%arg0: i32) -> (i32, i32, i32) {
    %c0_i32 = arith.constant 0 : i32
    %c0_i32_0 = arith.constant 0 : i32
    %c0_i32_1 = arith.constant 0 : i32
    return %arg0, %c0_i32, %c0_i32_0 : i32, i32, i32
  }
  func.func @transform_4(%arg0: i32) -> (i32, i32, i32) {
    %c0_i32 = arith.constant 0 : i32
    %c0_i32_0 = arith.constant 0 : i32
    %c0_i32_1 = arith.constant 0 : i32
    return %arg0, %c0_i32, %c0_i32_0 : i32, i32, i32
  }
  func.func @transform_5(%arg0: i32) -> (i32, i32, i32) {
    %c0_i32 = arith.constant 0 : i32
    %c0_i32_0 = arith.constant 0 : i32
    %c0_i32_1 = arith.constant 0 : i32
    return %arg0, %c0_i32, %c0_i32_0 : i32, i32, i32
  }
  func.func @transform_6(%arg0: i32) -> (i32, i32) {
    %c0_i32 = arith.constant 0 : i32
    %c0_i32_0 = arith.constant 0 : i32
    %c0_i32_1 = arith.constant 0 : i32
    return %c0_i32, %c0_i32_0 : i32, i32
  }
  func.func @transform_7(%arg0: i32) -> (i32, i32, i32) {
    %c0_i32 = arith.constant 0 : i32
    %c0_i32_0 = arith.constant 0 : i32
    %c0_i32_1 = arith.constant 0 : i32
    return %arg0, %c0_i32, %c0_i32_0 : i32, i32, i32
  }
  func.func @transform_8(%arg0: i32) -> (i32, i32, i32) {
    %c0_i32 = arith.constant 0 : i32
    %c0_i32_0 = arith.constant 0 : i32
    %c0_i32_1 = arith.constant 0 : i32
    return %arg0, %c0_i32, %c0_i32_0 : i32, i32, i32
  }
}

</mosaic_0001>

<llo_original>
// kernel: tpu_custom_call.1
$region0: #{tpu_custom_call.1}
  #allocation0 [shape = 'u32[]', space=smem, size = 0x4, offset = 0x4, fixed_abs, tag = 'smem constant byte address 0x4 - core index']
  #allocation1 [shape = 'u32[144,128]{1,0:T(1,128)}', space=vmem, size = 0x12000, scoped, tag = 'internal scratch']
  #allocation2 [shape = 'f32[8,128]{1,0:T(8,128)}', space=vmem, size = 0x1000, scoped, tag = 'scratch operand']
  #allocation3 [shape = 'f32[8,512]{1,0:T(8,128)}', space=vmem, size = 0x4000, scoped, tag = 'scratch operand']
  %s0 = inlined_call_operand.hbm [shape: f32[8,128], index: 0, kind: input, shape index: {}]
  %s1 = inlined_call_operand.vmem [shape: f32[2,1,128], index: 1, kind: input, shape index: {}]
  %s2 = inlined_call_operand.vmem [shape: f32[2,1,128], index: 2, kind: input, shape index: {}]
  %s3 = inlined_call_operand.hbm [shape: bf16[2,128,512], index: 3, kind: input, shape index: {}]
  %s4 = inlined_call_operand.hbm [shape: bf16[2,128,512], index: 4, kind: input, shape index: {}]
  %s5 = inlined_call_operand.vmem [shape: f32[2,1,512], index: 5, kind: input, shape index: {}]
  %s6 = inlined_call_operand.hbm [shape: f32[8,128], index: 6, kind: output, shape index: {0}]
  %s7 = inlined_call_operand.hbm [shape: f32[2,1,128], index: 7, kind: output, shape index: {1}]
  %s8 = inlined_call_operand.hbm [shape: f32[2,1,128], index: 8, kind: output, shape index: {2}]
  %9 = xla_tuple %s6, %s7, %s8
  %s10 = sld [smem:[#allocation0]]
  $region93: #{tpu_custom_call.1} parent=0
    _
  %s12 = ssub.s32 1, %s10
  %s13 = scalar_select 0, %s12, %s10
  $region1: #{tpu_custom_call.1} parent=0
    #allocation4 [shape = 'u8[4096]{0}', space=vmem, size = 0x1000, scoped, tag = 'input window, operand 0, single buffered']
    #allocation5 [shape = 's32[2]{0}', space=sflag, size = 0x8, scoped, tag = 'scoped memory for tpu_custom_call.1']
    #allocation6 [shape = 's32[2]{0}', space=sflag, size = 0x8, scoped, tag = 'scoped memory for tpu_custom_call.1']
    #allocation7 [shape = 'u8[262144]{0}', space=vmem, size = 0x40000, scoped, tag = 'input window, operand 3']
    #allocation8 [shape = 's32[2]{0}', space=sflag, size = 0x8, scoped, tag = 'scoped memory for tpu_custom_call.1']
    #allocation9 [shape = 'u8[262144]{0}', space=vmem, size = 0x40000, scoped, tag = 'input window, operand 4']
    #allocation10 [shape = 'u8[4096]{0}', space=vmem, size = 0x1000, scoped, tag = 'output window, operand 0, single buffered']
    #allocation11 [shape = 'u8[1024]{0}', space=vmem, size = 0x400, scoped, tag = 'output window, operand 1']
    #allocation12 [shape = 's32[2]{0}', space=sflag, size = 0x8, scoped, tag = 'scoped memory for tpu_custom_call.1']
    #allocation13 [shape = 'u8[1024]{0}', space=vmem, size = 0x400, scoped, tag = 'output window, operand 2']
    %14 = vsyncpa [#allocation5], 0
    %15 = vsyncpa [#allocation8], 0
    %s16 = scalar_lea.sflag [#allocation8], 1
    %17 = vsyncpa %s16, 0
    %18 = vsyncpa [#allocation6], 0
    %19 = vsyncpa [#allocation12], 0
    %s20 = scalar_lea.sflag [#allocation12], 1
    %21 = vsyncpa %s20, 0
    loop: start=0, step=1, limit=4
    $region2: #{tpu_custom_call.1} parent=1 // loop_pre_header
      _
    $region3: #{tpu_custom_call.1} parent=1 // loop_header
      %s23 = sphi 0, %s27
      %p24 = scmp.ge.s32.totalorder %s23, 4
      %s31 = sphi 0, %s31
      %s33 = sphi 0, %s31
      %s34 = sphi 0, %s33
      %s48 = sphi 0, %s34
      %s54 = sphi 0, %s56
      %s57 = sphi 0, %s54
      %s58 = sphi 0, %s57
      %s74 = sphi 0, %s58
      %s80 = sphi 0, %s82
      %s83 = sphi 0, %s80
      %s84 = sphi 0, %s83
      %s100 = sphi 0, %s84
      %s106 = sphi 0, %s108
      %s109 = sphi 0, %s106
      %s110 = sphi 0, %s109
      %s126 = sphi 0, %s110
      %s132 = sphi 0, %s134
      %s135 = sphi 0, %s132
      %s136 = sphi 0, %s135
      %s152 = sphi 0, %s136
      %s158 = sphi 0, %s160
      %s161 = sphi 0, %s158
      %s162 = sphi 0, %s161
      %s178 = sphi 0, %s162
      %s182 = sphi 0, %s182
      %s184 = sphi 0, %s182
      %s185 = sphi 0, %s184
      %s199 = sphi 0, %s185
      %s205 = sphi 0, %s207
      %s208 = sphi 0, %s205
      %s209 = sphi 0, %s208
      %s225 = sphi 0, %s209
      %s231 = sphi 0, %s233
      %s234 = sphi 0, %s231
      %s235 = sphi 0, %s234
      %s251 = sphi 0, %s235
    $region4: #{tpu_custom_call.1} parent=1 // loop_header_branch
      %26 = sbr.rel (%p24) target = $region8
    $region5: #{tpu_custom_call.1} parent=1 // loop_body
      %s28 = ssub.s32 %s23, 1
      %s29 = ssub.s32 %s23, 2
      %s30 = sadd.s32 %s23, 1
      %s32 = sadd.s32 %s31, 1
      %p35 = scmp.eq.s32.totalorder %s23, 1
      %p36 = scmp.ne.s32.totalorder %s31, %s33
      %p37 = scmp.eq.s32.totalorder %s23, 0
      %p38 = por %p36, %p37
      %p39 = scmp.ne.s32.totalorder %s31, %s33
      %p40 = scmp.eq.s32.totalorder %s28, 1
      %p41 = por %p39, %p40
      %p42 = scmp.ne.s32.totalorder %s33, %s34
      %p43 = scmp.eq.s32.totalorder %s28, 0
      %p44 = por %p42, %p43
      %p45 = scmp.ne.s32.totalorder %s33, %s34
      %p46 = scmp.eq.s32.totalorder %s29, 1
      %p47 = por %p45, %p46
      %p49 = scmp.ne.s32.totalorder %s34, %s48
      %p50 = scmp.eq.s32.totalorder %s29, 0
      %p51 = por %p49, %p50
      %s52 = ssub.s32 %s23, %s30
      %p53 = scmp.eq.s32.totalorder %s52, 0
      %s55 = sadd.s32 %s54, 1
      %s56 = scalar_select %p53, %s54, %s55
      %p59 = pneg %p53
      %p60 = scmp.eq.s32.totalorder %s23, 1
      %p61 = por %p59, %p60
      %p62 = scmp.ne.s32.totalorder %s54, %s57
      %p63 = scmp.eq.s32.totalorder %s23, 0
      %p64 = por %p62, %p63
      %p65 = scmp.ne.s32.totalorder %s54, %s57
      %p66 = scmp.eq.s32.totalorder %s28, 1
      %p67 = por %p65, %p66
      %p68 = scmp.ne.s32.totalorder %s57, %s58
      %p69 = scmp.eq.s32.totalorder %s28, 0
      %p70 = por %p68, %p69
      %p71 = scmp.ne.s32.totalorder %s57, %s58
      %p72 = scmp.eq.s32.totalorder %s29, 1
      %p73 = por %p71, %p72
      %p75 = scmp.ne.s32.totalorder %s58, %s74
      %p76 = scmp.eq.s32.totalorder %s29, 0
      %p77 = por %p75, %p76
      %s78 = ssub.s32 %s23, %s30
      %p79 = scmp.eq.s32.totalorder %s78, 0
      %s81 = sadd.s32 %s80, 1
      %s82 = scalar_select %p79, %s80, %s81
      %p85 = pneg %p79
      %p86 = scmp.eq.s32.totalorder %s23, 1
      %p87 = por %p85, %p86
      %p88 = scmp.ne.s32.totalorder %s80, %s83
      %p89 = scmp.eq.s32.totalorder %s23, 0
      %p90 = por %p88, %p89
      %p91 = scmp.ne.s32.totalorder %s80, %s83
      %p92 = scmp.eq.s32.totalorder %s28, 1
      %p93 = por %p91, %p92
      %p94 = scmp.ne.s32.totalorder %s83, %s84
      %p95 = scmp.eq.s32.totalorder %s28, 0
      %p96 = por %p94, %p95
      %p97 = scmp.ne.s32.totalorder %s83, %s84
      %p98 = scmp.eq.s32.totalorder %s29, 1
      %p99 = por %p97, %p98
      %p101 = scmp.ne.s32.totalorder %s84, %s100
      %p102 = scmp.eq.s32.totalorder %s29, 0
      %p103 = por %p101, %p102
      %s104 = ssub.s32 %s23, %s30
      %p105 = scmp.eq.s32.totalorder %s104, 0
      %s107 = sadd.s32 %s106, 1
      %s108 = scalar_select %p105, %s106, %s107
      %p111 = pneg %p105
      %p112 = scmp.eq.s32.totalorder %s23, 1
      %p113 = por %p111, %p112
      %p114 = scmp.ne.s32.totalorder %s106, %s109
      %p115 = scmp.eq.s32.totalorder %s23, 0
      %p116 = por %p114, %p115
      %p117 = scmp.ne.s32.totalorder %s106, %s109
      %p118 = scmp.eq.s32.totalorder %s28, 1
      %p119 = por %p117, %p118
      %p120 = scmp.ne.s32.totalorder %s109, %s110
      %p121 = scmp.eq.s32.totalorder %s28, 0
      %p122 = por %p120, %p121
      %p123 = scmp.ne.s32.totalorder %s109, %s110
      %p124 = scmp.eq.s32.totalorder %s29, 1
      %p125 = por %p123, %p124
      %p127 = scmp.ne.s32.totalorder %s110, %s126
      %p128 = scmp.eq.s32.totalorder %s29, 0
      %p129 = por %p127, %p128
      %s130 = ssub.s32 %s23, %s30
      %p131 = scmp.eq.s32.totalorder %s130, 0
      %s133 = sadd.s32 %s132, 1
      %s134 = scalar_select %p131, %s132, %s133
      %p137 = pneg %p131
      %p138 = scmp.eq.s32.totalorder %s23, 1
      %p139 = por %p137, %p138
      %p140 = scmp.ne.s32.totalorder %s132, %s135
      %p141 = scmp.eq.s32.totalorder %s23, 0
      %p142 = por %p140, %p141
      %p143 = scmp.ne.s32.totalorder %s132, %s135
      %p144 = scmp.eq.s32.totalorder %s28, 1
      %p145 = por %p143, %p144
      %p146 = scmp.ne.s32.totalorder %s135, %s136
      %p147 = scmp.eq.s32.totalorder %s28, 0
      %p148 = por %p146, %p147
      %p149 = scmp.ne.s32.totalorder %s135, %s136
      %p150 = scmp.eq.s32.totalorder %s29, 1
      %p151 = por %p149, %p150
      %p153 = scmp.ne.s32.totalorder %s136, %s152
      %p154 = scmp.eq.s32.totalorder %s29, 0
      %p155 = por %p153, %p154
      %s156 = ssub.s32 %s23, %s30
      %p157 = scmp.eq.s32.totalorder %s156, 0
      %s159 = sadd.s32 %s158, 1
      %s160 = scalar_select %p157, %s158, %s159
      %p163 = pneg %p157
      %p164 = scmp.eq.s32.totalorder %s23, 1
      %p165 = por %p163, %p164
      %p166 = scmp.ne.s32.totalorder %s158, %s161
      %p167 = scmp.eq.s32.totalorder %s23, 0
      %p168 = por %p166, %p167
      %p169 = scmp.ne.s32.totalorder %s158, %s161
      %p170 = scmp.eq.s32.totalorder %s28, 1
      %p171 = por %p169, %p170
      %p172 = scmp.ne.s32.totalorder %s161, %s162
      %p173 = scmp.eq.s32.totalorder %s28, 0
      %p174 = por %p172, %p173
      %p175 = scmp.ne.s32.totalorder %s161, %s162
      %p176 = scmp.eq.s32.totalorder %s29, 1
      %p177 = por %p175, %p176
      %p179 = scmp.ne.s32.totalorder %s162, %s178
      %p180 = scmp.eq.s32.totalorder %s29, 0
      %p181 = por %p179, %p180
      %s183 = sadd.s32 %s182, 1
      %p186 = scmp.eq.s32.totalorder %s23, 1
      %p187 = scmp.ne.s32.totalorder %s182, %s184
      %p188 = scmp.eq.s32.totalorder %s23, 0
      %p189 = por %p187, %p188
      %p190 = scmp.ne.s32.totalorder %s182, %s184
      %p191 = scmp.eq.s32.totalorder %s28, 1
      %p192 = por %p190, %p191
      %p193 = scmp.ne.s32.totalorder %s184, %s185
      %p194 = scmp.eq.s32.totalorder %s28, 0
      %p195 = por %p193, %p194
      %p196 = scmp.ne.s32.totalorder %s184, %s185
      %p197 = scmp.eq.s32.totalorder %s29, 1
      %p198 = por %p196, %p197
      %p200 = scmp.ne.s32.totalorder %s185, %s199
      %p201 = scmp.eq.s32.totalorder %s29, 0
      %p202 = por %p200, %p201
      %s203 = ssub.s32 %s23, %s30
      %p204 = scmp.eq.s32.totalorder %s203, 0
      %s206 = sadd.s32 %s205, 1
      %s207 = scalar_select %p204, %s205, %s206
      %p210 = pneg %p204
      %p211 = scmp.eq.s32.totalorder %s23, 1
      %p212 = por %p210, %p211
      %p213 = scmp.ne.s32.totalorder %s205, %s208
      %p214 = scmp.eq.s32.totalorder %s23, 0
      %p215 = por %p213, %p214
      %p216 = scmp.ne.s32.totalorder %s205, %s208
      %p217 = scmp.eq.s32.totalorder %s28, 1
      %p218 = por %p216, %p217
      %p219 = scmp.ne.s32.totalorder %s208, %s209
      %p220 = scmp.eq.s32.totalorder %s28, 0
      %p221 = por %p219, %p220
      %p222 = scmp.ne.s32.totalorder %s208, %s209
      %p223 = scmp.eq.s32.totalorder %s29, 1
      %p224 = por %p222, %p223
      %p226 = scmp.ne.s32.totalorder %s209, %s225
      %p227 = scmp.eq.s32.totalorder %s29, 0
      %p228 = por %p226, %p227
      %s229 = ssub.s32 %s23, %s30
      %p230 = scmp.eq.s32.totalorder %s229, 0
      %s232 = sadd.s32 %s231, 1
      %s233 = scalar_select %p230, %s231, %s232
      %p236 = pneg %p230
      %p237 = scmp.eq.s32.totalorder %s23, 1
      %p238 = por %p236, %p237
      %p239 = scmp.ne.s32.totalorder %s231, %s234
      %p240 = scmp.eq.s32.totalorder %s23, 0
      %p241 = por %p239, %p240
      %p242 = scmp.ne.s32.totalorder %s231, %s234
      %p243 = scmp.eq.s32.totalorder %s28, 1
      %p244 = por %p242, %p243
      %p245 = scmp.ne.s32.totalorder %s234, %s235
      %p246 = scmp.eq.s32.totalorder %s28, 0
      %p247 = por %p245, %p246
      %p248 = scmp.ne.s32.totalorder %s234, %s235
      %p249 = scmp.eq.s32.totalorder %s29, 1
      %p250 = por %p248, %p249
      %p252 = scmp.ne.s32.totalorder %s235, %s251
      %p253 = scmp.eq.s32.totalorder %s29, 0
      %p254 = por %p252, %p253
      %p255 = scmp.le.s32.totalorder 1, %s23
      %p256 = scmp.lt.s32.totalorder %s23, 3
      %p257 = pnand %p255, %p256
      %p258 = pneg %p257
      // Predicated region
      $region9: #{tpu_custom_call.1} parent=5 // pred_check
        _
      $region10: #{tpu_custom_call.1} parent=5 // pred_check_branch
        %260 = sbr.rel (%p257) target = $region12
      $region11: #{tpu_custom_call.1} parent=5 // pred_region
        %s261 = ssub.s32 %s23, 1
        // Predicated region
        $region13: #{tpu_custom_call.1} parent=11 // pred_check
          %p262 = pneg %p44
        $region14: #{tpu_custom_call.1} parent=11 // pred_check_branch
          %264 = sbr.rel (%p262) target = $region16
        $region15: #{tpu_custom_call.1} parent=11 // pred_region
          %s266 = ssub.s32 128, 128
          %267 = vsyncadd [#allocation5], %s266
          %s269 = sshll.u32 [#allocation4], 4
          %s270 = int_to_ptr.vmem [resolvable:$true] %s269
          %272 = dma.hbm_to_vmem [thread:$0]  %s0, 128, %s270, [#allocation5]
        $region16: #{tpu_custom_call.1} parent=11 // pred_fallthru
          _
      $region12: #{tpu_custom_call.1} parent=5 // pred_fallthru
        _
      %p273 = scmp.lt.s32.totalorder %s23, 2
      // Predicated region
      $region17: #{tpu_custom_call.1} parent=5 // pred_check
        %p274 = pneg %p273
      $region18: #{tpu_custom_call.1} parent=5 // pred_check_branch
        %276 = sbr.rel (%p274) target = $region20
      $region19: #{tpu_custom_call.1} parent=5 // pred_region
        // Predicated region
        $region21: #{tpu_custom_call.1} parent=19 // pred_check
          %p277 = pneg %p64
        $region22: #{tpu_custom_call.1} parent=19 // pred_check_branch
          %279 = sbr.rel (%p277) target = $region24
        $region23: #{tpu_custom_call.1} parent=19 // pred_region
          %p280 = scmp.lt.s32.totalorder %s23, 1
          %s281 = scalar_select %p280, %s23, 1
          %s282 = scalar_lea.vmem %s1, %s281
        $region24: #{tpu_custom_call.1} parent=19 // pred_fallthru
          _
        // Predicated region
        $region25: #{tpu_custom_call.1} parent=19 // pred_check
          %p283 = pneg %p90
        $region26: #{tpu_custom_call.1} parent=19 // pred_check_branch
          %285 = sbr.rel (%p283) target = $region28
        $region27: #{tpu_custom_call.1} parent=19 // pred_region
          %p286 = scmp.lt.s32.totalorder %s23, 1
          %s287 = scalar_select %p286, %s23, 1
          %s288 = scalar_lea.vmem %s2, %s287
        $region28: #{tpu_custom_call.1} parent=19 // pred_fallthru
          _
        // Predicated region
        $region29: #{tpu_custom_call.1} parent=19 // pred_check
          %p289 = pneg %p116
        $region30: #{tpu_custom_call.1} parent=19 // pred_check_branch
          %291 = sbr.rel (%p289) target = $region32
        $region31: #{tpu_custom_call.1} parent=19 // pred_region
          %s292 = sand.u32 %s23, 1
          %s293 = scalar_lea.sflag [#allocation8], %s292
          %s294 = sand.u32 %s106, 1
          %s295 = smul.addr %s294, 256
          %s296 = scalar_lea.vmem [#allocation7], %s295
          %s298 = ssub.s32 4096, 4096
          %299 = vsyncadd %s293, %s298
          %s300 = smul.addr %s23, 64
          %s301 = smul.addr %s300, 64
          %s302 = scalar_lea.hbm %s3, %s301
          %s303 = sshll.u32 %s296, 4
          %s304 = int_to_ptr.vmem [resolvable:$true] %s303
          %309 = dma.hbm_to_vmem [thread:$0]  %s302, 4096, %s304, %s293, 256, 256, 16
        $region32: #{tpu_custom_call.1} parent=19 // pred_fallthru
          _
        // Predicated region
        $region33: #{tpu_custom_call.1} parent=19 // pred_check
          %p310 = pneg %p142
        $region34: #{tpu_custom_call.1} parent=19 // pred_check_branch
          %312 = sbr.rel (%p310) target = $region36
        $region35: #{tpu_custom_call.1} parent=19 // pred_region
          %s313 = sand.u32 %s23, 1
          %s314 = scalar_lea.sflag [#allocation8], %s313
          %s315 = sand.u32 %s132, 1
          %s316 = smul.addr %s315, 256
          %s317 = scalar_lea.vmem [#allocation9], %s316
          %s319 = ssub.s32 4096, 4096
          %320 = vsyncadd %s314, %s319
          %s321 = smul.addr %s23, 64
          %s322 = smul.addr %s321, 64
          %s323 = scalar_lea.hbm %s4, %s322
          %s324 = sshll.u32 %s317, 4
          %s325 = int_to_ptr.vmem [resolvable:$true] %s324
          %330 = dma.hbm_to_vmem [thread:$0]  %s323, 4096, %s325, %s314, 256, 256, 16
        $region36: #{tpu_custom_call.1} parent=19 // pred_fallthru
          _
        // Predicated region
        $region37: #{tpu_custom_call.1} parent=19 // pred_check
          %p331 = pneg %p168
        $region38: #{tpu_custom_call.1} parent=19 // pred_check_branch
          %333 = sbr.rel (%p331) target = $region40
        $region39: #{tpu_custom_call.1} parent=19 // pred_region
          %p334 = scmp.lt.s32.totalorder %s23, 1
          %s335 = scalar_select %p334, %s23, 1
          %s336 = smul.addr %s335, 4
          %s337 = scalar_lea.vmem %s5, %s336
        $region40: #{tpu_custom_call.1} parent=19 // pred_fallthru
          _
      $region20: #{tpu_custom_call.1} parent=5 // pred_fallthru
        _
      %p338 = scmp.le.s32.totalorder 1, %s23
      %p339 = scmp.lt.s32.totalorder %s23, 3
      %p340 = pnand %p338, %p339
      %p341 = pneg %p340
      // Predicated region
      $region41: #{tpu_custom_call.1} parent=5 // pred_check
        _
      $region42: #{tpu_custom_call.1} parent=5 // pred_check_branch
        %343 = sbr.rel (%p340) target = $region44
      $region43: #{tpu_custom_call.1} parent=5 // pred_region
        %s344 = ssub.s32 %s23, 1
        // Predicated region
        $region45: #{tpu_custom_call.1} parent=43 // pred_check
          %p345 = pneg %p44
        $region46: #{tpu_custom_call.1} parent=43 // pred_check_branch
          %347 = sbr.rel (%p345) target = $region48
        $region47: #{tpu_custom_call.1} parent=43 // pred_region
          %348 = dma.done [#allocation5], 128
        $region48: #{tpu_custom_call.1} parent=43 // pred_fallthru
          _
        %s349 = sand.u32 %s28, 1
        %s350 = scalar_lea.sflag [#allocation8], %s349
        %s351 = sand.u32 %s109, 1
        %s352 = smul.addr %s351, 256
        %s353 = scalar_lea.vmem [#allocation7], %s352
        // Predicated region
        $region49: #{tpu_custom_call.1} parent=43 // pred_check
          %p354 = pneg %p122
        $region50: #{tpu_custom_call.1} parent=43 // pred_check_branch
          %356 = sbr.rel (%p354) target = $region52
        $region51: #{tpu_custom_call.1} parent=43 // pred_region
          %357 = dma.done %s350, 4096
        $region52: #{tpu_custom_call.1} parent=43 // pred_fallthru
          _
        %s358 = sand.u32 %s28, 1
        %s359 = scalar_lea.sflag [#allocation8], %s358
        %s360 = sand.u32 %s135, 1
        %s361 = smul.addr %s360, 256
        %s362 = scalar_lea.vmem [#allocation9], %s361
        // Predicated region
        $region53: #{tpu_custom_call.1} parent=43 // pred_check
          %p363 = pneg %p148
        $region54: #{tpu_custom_call.1} parent=43 // pred_check_branch
          %365 = sbr.rel (%p363) target = $region56
        $region55: #{tpu_custom_call.1} parent=43 // pred_region
          %366 = dma.done %s359, 4096
        $region56: #{tpu_custom_call.1} parent=43 // pred_fallthru
          _
        %p367 = pneg %p44
        %p368 = pneg %p41
        %p369 = scmp.lt.s32.totalorder %s28, 1
        %s370 = scalar_select %p369, %s28, 1
        %s371 = scalar_lea.vmem %s1, %s370
        %p372 = pneg %p70
        %p373 = pneg %p67
        %p374 = scmp.lt.s32.totalorder %s28, 1
        %s375 = scalar_select %p374, %s28, 1
        %s376 = scalar_lea.vmem %s2, %s375
        %p377 = pneg %p96
        %p378 = pneg %p93
        %s379 = sand.u32 %s28, 1
        %s380 = scalar_lea.sflag [#allocation8], %s379
        %s381 = sand.u32 %s109, 1
        %s382 = smul.addr %s381, 256
        %s383 = scalar_lea.vmem [#allocation7], %s382
        %p384 = pneg %p122
        %p385 = pneg %p119
        %s386 = sand.u32 %s28, 1
        %s387 = scalar_lea.sflag [#allocation8], %s386
        %s388 = sand.u32 %s135, 1
        %s389 = smul.addr %s388, 256
        %s390 = scalar_lea.vmem [#allocation9], %s389
        %p391 = pneg %p148
        %p392 = pneg %p145
        %p393 = scmp.lt.s32.totalorder %s28, 1
        %s394 = scalar_select %p393, %s28, 1
        %s395 = smul.addr %s394, 4
        %s396 = scalar_lea.vmem %s5, %s395
        %p397 = pneg %p174
        %p398 = pneg %p171
        %p399 = pneg %p195
        %p400 = pneg %p192
        %p401 = pneg %p221
        %p402 = pneg %p218
        %s403 = sand.u32 %s28, 1
        %s404 = scalar_lea.sflag [#allocation12], %s403
        %s405 = sand.u32 %s208, 1
        %s406 = scalar_lea.vmem [#allocation11], %s405
        %p407 = pneg %p247
        %p408 = pneg %p244
        %s409 = sand.u32 %s28, 1
        %s410 = scalar_lea.sflag [#allocation12], %s409
        %s411 = sand.u32 %s234, 1
        %s412 = scalar_lea.vmem [#allocation13], %s411
        %p413 = scmp.lt.s32.totalorder %s28, 1
        %s414 = scalar_select %p413, %s28, 1
        %s415 = scalar_lea.vmem %s1, %s414
        %p416 = scmp.lt.s32.totalorder %s28, 1
        %s417 = scalar_select %p416, %s28, 1
        %s418 = scalar_lea.vmem %s2, %s417
        %p419 = scmp.lt.s32.totalorder %s28, 1
        %s420 = scalar_select %p419, %s28, 1
        %s421 = smul.addr %s420, 4
        %s422 = scalar_lea.vmem %s5, %s421
        %p424 = scmp.eq.s32.totalorder %s28, 0
        // Predicated region
        $region57: #{tpu_custom_call.1} parent=43 // pred_check
          %p425 = pneg %p424
        $region58: #{tpu_custom_call.1} parent=43 // pred_check_branch
          %427 = sbr.rel (%p425) target = $region60
        $region59: #{tpu_custom_call.1} parent=43 // pred_region
          %v428 = vld [vmem:[#allocation4] sm:$0xff]
          %429 = vst [vmem:[#allocation2] sm:$0xff] %v428
        $region60: #{tpu_custom_call.1} parent=43 // pred_fallthru
          _
        %v430 = vld [vmem:[%s353] sm:$0xff]
        %v431 = vld [vmem:[%s353 + $0x8] sm:$0xff]
        %v432 = vld [vmem:[%s353 + $0x10] sm:$0xff]
        %v433 = vld [vmem:[%s353 + $0x18] sm:$0xff]
        %v434 = vld [vmem:[%s353 + $0x20] sm:$0xff]
        %v435 = vld [vmem:[%s353 + $0x28] sm:$0xff]
        %v436 = vld [vmem:[%s353 + $0x30] sm:$0xff]
        %v437 = vld [vmem:[%s353 + $0x38] sm:$0xff]
        %v438 = vld [vmem:[%s353 + $0x40] sm:$0xff]
        %v439 = vld [vmem:[%s353 + $0x48] sm:$0xff]
        %v440 = vld [vmem:[%s353 + $0x50] sm:$0xff]
        %v441 = vld [vmem:[%s353 + $0x58] sm:$0xff]
        %v442 = vld [vmem:[%s353 + $0x60] sm:$0xff]
        %v443 = vld [vmem:[%s353 + $0x68] sm:$0xff]
        %v444 = vld [vmem:[%s353 + $0x70] sm:$0xff]
        %v445 = vld [vmem:[%s353 + $0x78] sm:$0xff]
        %v446 = vld [vmem:[%s353 + $0x80] sm:$0xff]
        %v447 = vld [vmem:[%s353 + $0x88] sm:$0xff]
        %v448 = vld [vmem:[%s353 + $0x90] sm:$0xff]
        %v449 = vld [vmem:[%s353 + $0x98] sm:$0xff]
        %v450 = vld [vmem:[%s353 + $0xa0] sm:$0xff]
        %v451 = vld [vmem:[%s353 + $0xa8] sm:$0xff]
        %v452 = vld [vmem:[%s353 + $0xb0] sm:$0xff]
        %v453 = vld [vmem:[%s353 + $0xb8] sm:$0xff]
        %v454 = vld [vmem:[%s353 + $0xc0] sm:$0xff]
        %v455 = vld [vmem:[%s353 + $0xc8] sm:$0xff]
        %v456 = vld [vmem:[%s353 + $0xd0] sm:$0xff]
        %v457 = vld [vmem:[%s353 + $0xd8] sm:$0xff]
        %v458 = vld [vmem:[%s353 + $0xe0] sm:$0xff]
        %v459 = vld [vmem:[%s353 + $0xe8] sm:$0xff]
        %v460 = vld [vmem:[%s353 + $0xf0] sm:$0xff]
        %v461 = vld [vmem:[%s353 + $0xf8] sm:$0xff]
        %v462 = vld [vmem:[%s362] sm:$0xff]
        %v463 = vld [vmem:[%s362 + $0x8] sm:$0xff]
        %v464 = vld [vmem:[%s362 + $0x10] sm:$0xff]
        %v465 = vld [vmem:[%s362 + $0x18] sm:$0xff]
        %v466 = vld [vmem:[%s362 + $0x20] sm:$0xff]
        %v467 = vld [vmem:[%s362 + $0x28] sm:$0xff]
        %v468 = vld [vmem:[%s362 + $0x30] sm:$0xff]
        %v469 = vld [vmem:[%s362 + $0x38] sm:$0xff]
        %v470 = vld [vmem:[%s362 + $0x40] sm:$0xff]
        %v471 = vld [vmem:[%s362 + $0x48] sm:$0xff]
        %v472 = vld [vmem:[%s362 + $0x50] sm:$0xff]
        %v473 = vld [vmem:[%s362 + $0x58] sm:$0xff]
        %v474 = vld [vmem:[%s362 + $0x60] sm:$0xff]
        %v475 = vld [vmem:[%s362 + $0x68] sm:$0xff]
        %v476 = vld [vmem:[%s362 + $0x70] sm:$0xff]
        %v477 = vld [vmem:[%s362 + $0x78] sm:$0xff]
        %v478 = vld [vmem:[%s362 + $0x80] sm:$0xff]
        %v479 = vld [vmem:[%s362 + $0x88] sm:$0xff]
        %v480 = vld [vmem:[%s362 + $0x90] sm:$0xff]
        %v481 = vld [vmem:[%s362 + $0x98] sm:$0xff]
        %v482 = vld [vmem:[%s362 + $0xa0] sm:$0xff]
        %v483 = vld [vmem:[%s362 + $0xa8] sm:$0xff]
        %v484 = vld [vmem:[%s362 + $0xb0] sm:$0xff]
        %v485 = vld [vmem:[%s362 + $0xb8] sm:$0xff]
        %v486 = vld [vmem:[%s362 + $0xc0] sm:$0xff]
        %v487 = vld [vmem:[%s362 + $0xc8] sm:$0xff]
        %v488 = vld [vmem:[%s362 + $0xd0] sm:$0xff]
        %v489 = vld [vmem:[%s362 + $0xd8] sm:$0xff]
        %v490 = vld [vmem:[%s362 + $0xe0] sm:$0xff]
        %v491 = vld [vmem:[%s362 + $0xe8] sm:$0xff]
        %v492 = vld [vmem:[%s362 + $0xf0] sm:$0xff]
        %v493 = vld [vmem:[%s362 + $0xf8] sm:$0xff]
        %v494 = vld [vmem:[%s422] sm:$0xf]
        %v495 = vld [vmem:[%s415] sm:$0x1]
        %v496 = vld [vmem:[%s418] sm:$0x1]
        %v497 = vld [vmem:[#allocation2] sm:$0xff]
        %v498 = vpack.c.bf16 %v497, %v497
        %v500 = vlaneseq
        %v501 = vshrl.u32 %v500, 7
        %v502 = vsub.s32 0, %v501
        %v503 = vrot.slane %v494, %v502
        %v504 = vlaneseq
        %v505 = vshrl.u32 %v504, 7
        %v506 = vsub.s32 1, %v505
        %v507 = vrot.slane %v494, %v506
        %v508 = vlaneseq
        %v509 = vshrl.u32 %v508, 7
        %v510 = vsub.s32 2, %v509
        %v511 = vrot.slane %v494, %v510
        %v512 = vlaneseq
        %v513 = vshrl.u32 %v512, 7
        %v514 = vsub.s32 3, %v513
        %v515 = vrot.slane %v494, %v514
        %v552 = vunpack.c.l.b16 %v430
        %v553 = vunpack.c.h.b16 %v430
        %v554 = vunpack.c.l.b16 %v431
        %v555 = vunpack.c.h.b16 %v431
        %v556 = vunpack.c.l.b16 %v432
        %v557 = vunpack.c.h.b16 %v432
        %v558 = vunpack.c.l.b16 %v433
        %v559 = vunpack.c.h.b16 %v433
        %v560 = vunpack.c.l.b16 %v434
        %v561 = vunpack.c.h.b16 %v434
        %v562 = vunpack.c.l.b16 %v435
        %v563 = vunpack.c.h.b16 %v435
        %v564 = vunpack.c.l.b16 %v436
        %v565 = vunpack.c.h.b16 %v436
        %v566 = vunpack.c.l.b16 %v437
        %v567 = vunpack.c.h.b16 %v437
        %v568 = vunpack.c.l.b16 %v438
        %v569 = vunpack.c.h.b16 %v438
        %v570 = vunpack.c.l.b16 %v439
        %v571 = vunpack.c.h.b16 %v439
        %v572 = vunpack.c.l.b16 %v440
        %v573 = vunpack.c.h.b16 %v440
        %v574 = vunpack.c.l.b16 %v441
        %v575 = vunpack.c.h.b16 %v441
        %v576 = vunpack.c.l.b16 %v442
        %v577 = vunpack.c.h.b16 %v442
        %v578 = vunpack.c.l.b16 %v443
        %v579 = vunpack.c.h.b16 %v443
        %v580 = vunpack.c.l.b16 %v444
        %v581 = vunpack.c.h.b16 %v444
        %v582 = vunpack.c.l.b16 %v445
        %v583 = vunpack.c.h.b16 %v445
        %v584 = vunpack.c.l.b16 %v446
        %v585 = vunpack.c.h.b16 %v446
        %v586 = vunpack.c.l.b16 %v447
        %v587 = vunpack.c.h.b16 %v447
        %v588 = vunpack.c.l.b16 %v448
        %v589 = vunpack.c.h.b16 %v448
        %v590 = vunpack.c.l.b16 %v449
        %v591 = vunpack.c.h.b16 %v449
        %v592 = vunpack.c.l.b16 %v450
        %v593 = vunpack.c.h.b16 %v450
        %v594 = vunpack.c.l.b16 %v451
        %v595 = vunpack.c.h.b16 %v451
        %v596 = vunpack.c.l.b16 %v452
        %v597 = vunpack.c.h.b16 %v452
        %v598 = vunpack.c.l.b16 %v453
        %v599 = vunpack.c.h.b16 %v453
        %v600 = vunpack.c.l.b16 %v454
        %v601 = vunpack.c.h.b16 %v454
        %v602 = vunpack.c.l.b16 %v455
        %v603 = vunpack.c.h.b16 %v455
        %v604 = vunpack.c.l.b16 %v456
        %v605 = vunpack.c.h.b16 %v456
        %v606 = vunpack.c.l.b16 %v457
        %v607 = vunpack.c.h.b16 %v457
        %v608 = vunpack.c.l.b16 %v458
        %v609 = vunpack.c.h.b16 %v458
        %v610 = vunpack.c.l.b16 %v459
        %v611 = vunpack.c.h.b16 %v459
        %v612 = vunpack.c.l.b16 %v460
        %v613 = vunpack.c.h.b16 %v460
        %v614 = vunpack.c.l.b16 %v461
        %v615 = vunpack.c.h.b16 %v461
        %v616 = vpack.c.b16 %v556, %v552
        %v617 = vpack.c.b16 %v557, %v553
        %v618 = vpack.c.b16 %v558, %v554
        %v619 = vpack.c.b16 %v559, %v555
        %v620 = vpack.c.b16 %v564, %v560
        %v621 = vpack.c.b16 %v565, %v561
        %v622 = vpack.c.b16 %v566, %v562
        %v623 = vpack.c.b16 %v567, %v563
        %v624 = vpack.c.b16 %v572, %v568
        %v625 = vpack.c.b16 %v573, %v569
        %v626 = vpack.c.b16 %v574, %v570
        %v627 = vpack.c.b16 %v575, %v571
        %v628 = vpack.c.b16 %v580, %v576
        %v629 = vpack.c.b16 %v581, %v577
        %v630 = vpack.c.b16 %v582, %v578
        %v631 = vpack.c.b16 %v583, %v579
        %v632 = vpack.c.b16 %v588, %v584
        %v633 = vpack.c.b16 %v589, %v585
        %v634 = vpack.c.b16 %v590, %v586
        %v635 = vpack.c.b16 %v591, %v587
        %v636 = vpack.c.b16 %v596, %v592
        %v637 = vpack.c.b16 %v597, %v593
        %v638 = vpack.c.b16 %v598, %v594
        %v639 = vpack.c.b16 %v599, %v595
        %v640 = vpack.c.b16 %v604, %v600
        %v641 = vpack.c.b16 %v605, %v601
        %v642 = vpack.c.b16 %v606, %v602
        %v643 = vpack.c.b16 %v607, %v603
        %v644 = vpack.c.b16 %v612, %v608
        %v645 = vpack.c.b16 %v613, %v609
        %v646 = vpack.c.b16 %v614, %v610
        %v647 = vpack.c.b16 %v615, %v611
        %680 = vmatprep.subr.bf16.mxu0 %v617
        %681 = vmatpush1.bf16.msra.mxu0 %v616
        %682 = vmatprep.subr.bf16.mxu0 %v621
        %683 = vmatpush1.bf16.msra.mxu0 %v620
        %684 = vmatprep.subr.bf16.mxu0 %v625
        %685 = vmatpush1.bf16.msra.mxu0 %v624
        %686 = vmatprep.subr.bf16.mxu0 %v629
        %687 = vmatpush1.bf16.msra.mxu0 %v628
        %688 = vmatprep.subr.bf16.mxu0 %v633
        %689 = vmatpush1.bf16.msra.mxu0 %v632
        %690 = vmatprep.subr.bf16.mxu0 %v637
        %691 = vmatpush1.bf16.msra.mxu0 %v636
        %692 = vmatprep.subr.bf16.mxu0 %v641
        %693 = vmatpush1.bf16.msra.mxu0 %v640
        %694 = vmatprep.subr.bf16.mxu0 %v645
        %695 = vmatpush1.bf16.msra.mxu0 %v644
        %696 = vmatprep.subr.bf16.mxu0 0
        %697 = vmatpush1.bf16.msra.mxu0 0
        %698 = vmatprep.subr.bf16.mxu0 0
        %699 = vmatpush1.bf16.msra.mxu0 0
        %700 = vmatprep.subr.bf16.mxu0 0
        %701 = vmatpush1.bf16.msra.mxu0 0
        %702 = vmatprep.subr.bf16.mxu0 0
        %703 = vmatpush1.bf16.msra.mxu0 0
        %704 = vmatprep.subr.bf16.mxu0 0
        %705 = vmatpush1.bf16.msra.mxu0 0
        %706 = vmatprep.subr.bf16.mxu0 0
        %707 = vmatpush1.bf16.msra.mxu0 0
        %708 = vmatprep.subr.bf16.mxu0 0
        %709 = vmatpush1.bf16.msra.mxu0 0
        %710 = vmatprep.subr.bf16.mxu0 0
        %711 = vmatpush1.bf16.msra.mxu0 0
        %712 = vmatprep.mubr.bf16.mxu0 0
        %713 = vmatmul.mubr.bf16.gmra.mrb[0].mxu0 %v498
        %v714 = vpop.f32.mrb[0].mxu0
        %v715 = vadd.f32 %v503, %v714
        %v716 = vpop.f32.mrb[0].mxu0
        %v717 = vadd.f32 %v507, %v716
        %v718 = vpop.f32.mrb[0].mxu0
        %v719 = vpop.f32.mrb[0].mxu0
        %720 = vdwg.mxu0
        %721 = vmatprep.subr.bf16.mxu0 %v619
        %722 = vmatpush1.bf16.msra.mxu0 %v618
        %723 = vmatprep.subr.bf16.mxu0 %v623
        %724 = vmatpush1.bf16.msra.mxu0 %v622
        %725 = vmatprep.subr.bf16.mxu0 %v627
        %726 = vmatpush1.bf16.msra.mxu0 %v626
        %727 = vmatprep.subr.bf16.mxu0 %v631
        %728 = vmatpush1.bf16.msra.mxu0 %v630
        %729 = vmatprep.subr.bf16.mxu0 %v635
        %730 = vmatpush1.bf16.msra.mxu0 %v634
        %731 = vmatprep.subr.bf16.mxu0 %v639
        %732 = vmatpush1.bf16.msra.mxu0 %v638
        %733 = vmatprep.subr.bf16.mxu0 %v643
        %734 = vmatpush1.bf16.msra.mxu0 %v642
        %735 = vmatprep.subr.bf16.mxu0 %v647
        %736 = vmatpush1.bf16.msra.mxu0 %v646
        %737 = vmatprep.subr.bf16.mxu0 0
        %738 = vmatpush1.bf16.msra.mxu0 0
        %739 = vmatprep.subr.bf16.mxu0 0
        %740 = vmatpush1.bf16.msra.mxu0 0
        %741 = vmatprep.subr.bf16.mxu0 0
        %742 = vmatpush1.bf16.msra.mxu0 0
        %743 = vmatprep.subr.bf16.mxu0 0
        %744 = vmatpush1.bf16.msra.mxu0 0
        %745 = vmatprep.subr.bf16.mxu0 0
        %746 = vmatpush1.bf16.msra.mxu0 0
        %747 = vmatprep.subr.bf16.mxu0 0
        %748 = vmatpush1.bf16.msra.mxu0 0
        %749 = vmatprep.subr.bf16.mxu0 0
        %750 = vmatpush1.bf16.msra.mxu0 0
        %751 = vmatprep.subr.bf16.mxu0 0
        %752 = vmatpush1.bf16.msra.mxu0 0
        %753 = vmatprep.mubr.bf16.mxu0 0
        %754 = vmatmul.mubr.bf16.gmra.mrb[0].mxu0 %v498
        %v755 = vpop.f32.mrb[0].mxu0
        %v756 = vadd.f32 %v511, %v755
        %v757 = vpop.f32.mrb[0].mxu0
        %v758 = vadd.f32 %v515, %v757
        %v759 = vpop.f32.mrb[0].mxu0
        %v760 = vpop.f32.mrb[0].mxu0
        %761 = vdwg.mxu0
        %762 = vst [vmem:[#allocation3] sm:$0xff] %v715
        %763 = vst [vmem:[#allocation3 + $0x8] sm:$0xff] %v717
        %764 = vst [vmem:[#allocation3 + $0x10] sm:$0xff] %v756
        %765 = vst [vmem:[#allocation3 + $0x18] sm:$0xff] %v758
        %s766 = smul.u32 0, 4
        %s767 = smul.addr %s766, 8
        %s768 = scalar_lea.vmem [#allocation3], %s767
        %v769 = vld [vmem:[%s768] sm:$0xff]
        %v770 = vld [vmem:[%s768 + $0x8] sm:$0xff]
        %v771 = vld [vmem:[%s768 + $0x10] sm:$0xff]
        %v772 = vld [vmem:[%s768 + $0x18] sm:$0xff]
        %v773 = vpack.c.bf16 %v495, %v495
        %v806 = vunpack.c.l.b16 %v462
        %v807 = vunpack.c.h.b16 %v462
        %v808 = vunpack.c.l.b16 %v463
        %v809 = vunpack.c.h.b16 %v463
        %v810 = vunpack.c.l.b16 %v464
        %v811 = vunpack.c.h.b16 %v464
        %v812 = vunpack.c.l.b16 %v465
        %v813 = vunpack.c.h.b16 %v465
        %v814 = vunpack.c.l.b16 %v466
        %v815 = vunpack.c.h.b16 %v466
        %v816 = vunpack.c.l.b16 %v467
        %v817 = vunpack.c.h.b16 %v467
        %v818 = vunpack.c.l.b16 %v468
        %v819 = vunpack.c.h.b16 %v468
        %v820 = vunpack.c.l.b16 %v469
        %v821 = vunpack.c.h.b16 %v469
        %v822 = vunpack.c.l.b16 %v470
        %v823 = vunpack.c.h.b16 %v470
        %v824 = vunpack.c.l.b16 %v471
        %v825 = vunpack.c.h.b16 %v471
        %v826 = vunpack.c.l.b16 %v472
        %v827 = vunpack.c.h.b16 %v472
        %v828 = vunpack.c.l.b16 %v473
        %v829 = vunpack.c.h.b16 %v473
        %v830 = vunpack.c.l.b16 %v474
        %v831 = vunpack.c.h.b16 %v474
        %v832 = vunpack.c.l.b16 %v475
        %v833 = vunpack.c.h.b16 %v475
        %v834 = vunpack.c.l.b16 %v476
        %v835 = vunpack.c.h.b16 %v476
        %v836 = vunpack.c.l.b16 %v477
        %v837 = vunpack.c.h.b16 %v477
        %v838 = vunpack.c.l.b16 %v478
        %v839 = vunpack.c.h.b16 %v478
        %v840 = vunpack.c.l.b16 %v479
        %v841 = vunpack.c.h.b16 %v479
        %v842 = vunpack.c.l.b16 %v480
        %v843 = vunpack.c.h.b16 %v480
        %v844 = vunpack.c.l.b16 %v481
        %v845 = vunpack.c.h.b16 %v481
        %v846 = vunpack.c.l.b16 %v482
        %v847 = vunpack.c.h.b16 %v482
        %v848 = vunpack.c.l.b16 %v483
        %v849 = vunpack.c.h.b16 %v483
        %v850 = vunpack.c.l.b16 %v484
        %v851 = vunpack.c.h.b16 %v484
        %v852 = vunpack.c.l.b16 %v485
        %v853 = vunpack.c.h.b16 %v485
        %v854 = vunpack.c.l.b16 %v486
        %v855 = vunpack.c.h.b16 %v486
        %v856 = vunpack.c.l.b16 %v487
        %v857 = vunpack.c.h.b16 %v487
        %v858 = vunpack.c.l.b16 %v488
        %v859 = vunpack.c.h.b16 %v488
        %v860 = vunpack.c.l.b16 %v489
        %v861 = vunpack.c.h.b16 %v489
        %v862 = vunpack.c.l.b16 %v490
        %v863 = vunpack.c.h.b16 %v490
        %v864 = vunpack.c.l.b16 %v491
        %v865 = vunpack.c.h.b16 %v491
        %v866 = vunpack.c.l.b16 %v492
        %v867 = vunpack.c.h.b16 %v492
        %v868 = vunpack.c.l.b16 %v493
        %v869 = vunpack.c.h.b16 %v493
        %v870 = vpack.c.b16 %v810, %v806
        %v871 = vpack.c.b16 %v811, %v807
        %v872 = vpack.c.b16 %v812, %v808
        %v873 = vpack.c.b16 %v813, %v809
        %v874 = vpack.c.b16 %v818, %v814
        %v875 = vpack.c.b16 %v819, %v815
        %v876 = vpack.c.b16 %v820, %v816
        %v877 = vpack.c.b16 %v821, %v817
        %v878 = vpack.c.b16 %v826, %v822
        %v879 = vpack.c.b16 %v827, %v823
        %v880 = vpack.c.b16 %v828, %v824
        %v881 = vpack.c.b16 %v829, %v825
        %v882 = vpack.c.b16 %v834, %v830
        %v883 = vpack.c.b16 %v835, %v831
        %v884 = vpack.c.b16 %v836, %v832
        %v885 = vpack.c.b16 %v837, %v833
        %v886 = vpack.c.b16 %v842, %v838
        %v887 = vpack.c.b16 %v843, %v839
        %v888 = vpack.c.b16 %v844, %v840
        %v889 = vpack.c.b16 %v845, %v841
        %v890 = vpack.c.b16 %v850, %v846
        %v891 = vpack.c.b16 %v851, %v847
        %v892 = vpack.c.b16 %v852, %v848
        %v893 = vpack.c.b16 %v853, %v849
        %v894 = vpack.c.b16 %v858, %v854
        %v895 = vpack.c.b16 %v859, %v855
        %v896 = vpack.c.b16 %v860, %v856
        %v897 = vpack.c.b16 %v861, %v857
        %v898 = vpack.c.b16 %v866, %v862
        %v899 = vpack.c.b16 %v867, %v863
        %v900 = vpack.c.b16 %v868, %v864
        %v901 = vpack.c.b16 %v869, %v865
        %934 = vmatprep.subr.bf16.mxu0 %v871
        %935 = vmatpush1.bf16.msra.mxu0 %v870
        %936 = vmatprep.subr.bf16.mxu0 %v875
        %937 = vmatpush1.bf16.msra.mxu0 %v874
        %938 = vmatprep.subr.bf16.mxu0 %v879
        %939 = vmatpush1.bf16.msra.mxu0 %v878
        %940 = vmatprep.subr.bf16.mxu0 %v883
        %941 = vmatpush1.bf16.msra.mxu0 %v882
        %942 = vmatprep.subr.bf16.mxu0 %v887
        %943 = vmatpush1.bf16.msra.mxu0 %v886
        %944 = vmatprep.subr.bf16.mxu0 %v891
        %945 = vmatpush1.bf16.msra.mxu0 %v890
        %946 = vmatprep.subr.bf16.mxu0 %v895
        %947 = vmatpush1.bf16.msra.mxu0 %v894
        %948 = vmatprep.subr.bf16.mxu0 %v899
        %949 = vmatpush1.bf16.msra.mxu0 %v898
        %950 = vmatprep.subr.bf16.mxu0 0
        %951 = vmatpush1.bf16.msra.mxu0 0
        %952 = vmatprep.subr.bf16.mxu0 0
        %953 = vmatpush1.bf16.msra.mxu0 0
        %954 = vmatprep.subr.bf16.mxu0 0
        %955 = vmatpush1.bf16.msra.mxu0 0
        %956 = vmatprep.subr.bf16.mxu0 0
        %957 = vmatpush1.bf16.msra.mxu0 0
        %958 = vmatprep.subr.bf16.mxu0 0
        %959 = vmatpush1.bf16.msra.mxu0 0
        %960 = vmatprep.subr.bf16.mxu0 0
        %961 = vmatpush1.bf16.msra.mxu0 0
        %962 = vmatprep.subr.bf16.mxu0 0
        %963 = vmatpush1.bf16.msra.mxu0 0
        %964 = vmatprep.subr.bf16.mxu0 0
        %965 = vmatpush1.bf16.msra.mxu0 0
        %966 = vmatprep.mubr.bf16.mxu0 0
        %967 = vmatmul.mubr.bf16.gmra.mrb[0].mxu0 %v773
        %v968 = vpop.f32.mrb[0].mxu0
        %v969 = vadd.f32 0.0, %v968
        %v970 = vpop.f32.mrb[0].mxu0
        %v971 = vadd.f32 0.0, %v970
        %v972 = vpop.f32.mrb[0].mxu0
        %v973 = vpop.f32.mrb[0].mxu0
        %974 = vdwg.mxu0
        %975 = vmatprep.subr.bf16.mxu0 %v873
        %976 = vmatpush1.bf16.msra.mxu0 %v872
        %977 = vmatprep.subr.bf16.mxu0 %v877
        %978 = vmatpush1.bf16.msra.mxu0 %v876
        %979 = vmatprep.subr.bf16.mxu0 %v881
        %980 = vmatpush1.bf16.msra.mxu0 %v880
        %981 = vmatprep.subr.bf16.mxu0 %v885
        %982 = vmatpush1.bf16.msra.mxu0 %v884
        %983 = vmatprep.subr.bf16.mxu0 %v889
        %984 = vmatpush1.bf16.msra.mxu0 %v888
        %985 = vmatprep.subr.bf16.mxu0 %v893
        %986 = vmatpush1.bf16.msra.mxu0 %v892
        %987 = vmatprep.subr.bf16.mxu0 %v897
        %988 = vmatpush1.bf16.msra.mxu0 %v896
        %989 = vmatprep.subr.bf16.mxu0 %v901
        %990 = vmatpush1.bf16.msra.mxu0 %v900
        %991 = vmatprep.subr.bf16.mxu0 0
        %992 = vmatpush1.bf16.msra.mxu0 0
        %993 = vmatprep.subr.bf16.mxu0 0
        %994 = vmatpush1.bf16.msra.mxu0 0
        %995 = vmatprep.subr.bf16.mxu0 0
        %996 = vmatpush1.bf16.msra.mxu0 0
        %997 = vmatprep.subr.bf16.mxu0 0
        %998 = vmatpush1.bf16.msra.mxu0 0
        %999 = vmatprep.subr.bf16.mxu0 0
        %1000 = vmatpush1.bf16.msra.mxu0 0
        %1001 = vmatprep.subr.bf16.mxu0 0
        %1002 = vmatpush1.bf16.msra.mxu0 0
        %1003 = vmatprep.subr.bf16.mxu0 0
        %1004 = vmatpush1.bf16.msra.mxu0 0
        %1005 = vmatprep.subr.bf16.mxu0 0
        %1006 = vmatpush1.bf16.msra.mxu0 0
        %1007 = vmatprep.mubr.bf16.mxu0 0
        %1008 = vmatmul.mubr.bf16.gmra.mrb[0].mxu0 %v773
        %v1009 = vpop.f32.mrb[0].mxu0
        %v1010 = vadd.f32 0.0, %v1009
        %v1011 = vpop.f32.mrb[0].mxu0
        %v1012 = vadd.f32 0.0, %v1011
        %v1013 = vpop.f32.mrb[0].mxu0
        %v1014 = vpop.f32.mrb[0].mxu0
        %1015 = vdwg.mxu0
        %v1016 = vadd.f32 %v769, %v969
        %v1017 = vadd.f32 %v770, %v971
        %v1018 = vadd.f32 %v771, %v1010
        %v1019 = vadd.f32 %v772, %v1012
        %v1020 = vxor.u32 %v1016, 2147483648
        %v1021 = vxor.u32 %v1017, 2147483648
        %v1022 = vmul.f32 %v1020, 1.442695
        %v1023 = vpow.pop %v1022
        %v1024 = vmul.f32 %v1021, 1.442695
        %v1025 = vpow.pop %v1024
        %v1026 = vadd.f32 %v1023, 1.0
        %v1027 = vadd.f32 %v1025, 1.0
        %v1028 = vrcp.pop %v1026
        %v1029 = vmul.f32 1.0, %v1028
        %v1030 = vrcp.pop %v1027
        %v1031 = vmul.f32 1.0, %v1030
        %v1032 = vtanh.pop %v1018
        %v1033 = vxor.u32 %v1019, 2147483648
        %v1034 = vmul.f32 %v1033, 1.442695
        %v1035 = vpow.pop %v1034
        %v1036 = vadd.f32 %v1035, 1.0
        %v1037 = vrcp.pop %v1036
        %v1038 = vmul.f32 1.0, %v1037
        %v1039 = vmul.f32 %v1031, %v496
        %v1040 = vmul.f32 %v1029, %v1032
        %v1041 = vadd.f32 %v1039, %v1040
        %v1042 = vtanh.pop %v1041
        %v1043 = vmul.f32 %v1038, %v1042
        %v1044 = vpack.c.bf16 %v1043, %v1043
        %1045 = vmatprep.subr.bf16.mxu0 %v871
        %1046 = vmatpush1.bf16.msra.mxu0 %v870
        %1047 = vmatprep.subr.bf16.mxu0 %v875
        %1048 = vmatpush1.bf16.msra.mxu0 %v874
        %1049 = vmatprep.subr.bf16.mxu0 %v879
        %1050 = vmatpush1.bf16.msra.mxu0 %v878
        %1051 = vmatprep.subr.bf16.mxu0 %v883
        %1052 = vmatpush1.bf16.msra.mxu0 %v882
        %1053 = vmatprep.subr.bf16.mxu0 %v887
        %1054 = vmatpush1.bf16.msra.mxu0 %v886
        %1055 = vmatprep.subr.bf16.mxu0 %v891
        %1056 = vmatpush1.bf16.msra.mxu0 %v890
        %1057 = vmatprep.subr.bf16.mxu0 %v895
        %1058 = vmatpush1.bf16.msra.mxu0 %v894
        %1059 = vmatprep.subr.bf16.mxu0 %v899
        %1060 = vmatpush1.bf16.msra.mxu0 %v898
        %1061 = vmatprep.subr.bf16.mxu0 0
        %1062 = vmatpush1.bf16.msra.mxu0 0
        %1063 = vmatprep.subr.bf16.mxu0 0
        %1064 = vmatpush1.bf16.msra.mxu0 0
        %1065 = vmatprep.subr.bf16.mxu0 0
        %1066 = vmatpush1.bf16.msra.mxu0 0
        %1067 = vmatprep.subr.bf16.mxu0 0
        %1068 = vmatpush1.bf16.msra.mxu0 0
        %1069 = vmatprep.subr.bf16.mxu0 0
        %1070 = vmatpush1.bf16.msra.mxu0 0
        %1071 = vmatprep.subr.bf16.mxu0 0
        %1072 = vmatpush1.bf16.msra.mxu0 0
        %1073 = vmatprep.subr.bf16.mxu0 0
        %1074 = vmatpush1.bf16.msra.mxu0 0
        %1075 = vmatprep.subr.bf16.mxu0 0
        %1076 = vmatpush1.bf16.msra.mxu0 0
        %1077 = vmatprep.mubr.bf16.mxu0 0
        %1078 = vmatmul.mubr.bf16.gmra.mrb[0].mxu0 %v1044
        %v1079 = vpop.f32.mrb[0].mxu0
        %v1080 = vadd.f32 0.0, %v1079
        %v1081 = vpop.f32.mrb[0].mxu0
        %v1082 = vadd.f32 0.0, %v1081
        %v1083 = vpop.f32.mrb[0].mxu0
        %v1084 = vpop.f32.mrb[0].mxu0
        %1085 = vdwg.mxu0
        %1086 = vmatprep.subr.bf16.mxu0 %v873
        %1087 = vmatpush1.bf16.msra.mxu0 %v872
        %1088 = vmatprep.subr.bf16.mxu0 %v877
        %1089 = vmatpush1.bf16.msra.mxu0 %v876
        %1090 = vmatprep.subr.bf16.mxu0 %v881
        %1091 = vmatpush1.bf16.msra.mxu0 %v880
        %1092 = vmatprep.subr.bf16.mxu0 %v885
        %1093 = vmatpush1.bf16.msra.mxu0 %v884
        %1094 = vmatprep.subr.bf16.mxu0 %v889
        %1095 = vmatpush1.bf16.msra.mxu0 %v888
        %1096 = vmatprep.subr.bf16.mxu0 %v893
        %1097 = vmatpush1.bf16.msra.mxu0 %v892
        %1098 = vmatprep.subr.bf16.mxu0 %v897
        %1099 = vmatpush1.bf16.msra.mxu0 %v896
        %1100 = vmatprep.subr.bf16.mxu0 %v901
        %1101 = vmatpush1.bf16.msra.mxu0 %v900
        %1102 = vmatprep.subr.bf16.mxu0 0
        %1103 = vmatpush1.bf16.msra.mxu0 0
        %1104 = vmatprep.subr.bf16.mxu0 0
        %1105 = vmatpush1.bf16.msra.mxu0 0
        %1106 = vmatprep.subr.bf16.mxu0 0
        %1107 = vmatpush1.bf16.msra.mxu0 0
        %1108 = vmatprep.subr.bf16.mxu0 0
        %1109 = vmatpush1.bf16.msra.mxu0 0
        %1110 = vmatprep.subr.bf16.mxu0 0
        %1111 = vmatpush1.bf16.msra.mxu0 0
        %1112 = vmatprep.subr.bf16.mxu0 0
        %1113 = vmatpush1.bf16.msra.mxu0 0
        %1114 = vmatprep.subr.bf16.mxu0 0
        %1115 = vmatpush1.bf16.msra.mxu0 0
        %1116 = vmatprep.subr.bf16.mxu0 0
        %1117 = vmatpush1.bf16.msra.mxu0 0
        %1118 = vmatprep.mubr.bf16.mxu0 0
        %1119 = vmatmul.mubr.bf16.gmra.mrb[0].mxu0 %v1044
        %v1120 = vpop.f32.mrb[0].mxu0
        %v1121 = vadd.f32 0.0, %v1120
        %v1122 = vpop.f32.mrb[0].mxu0
        %v1123 = vadd.f32 0.0, %v1122
        %v1124 = vpop.f32.mrb[0].mxu0
        %v1125 = vpop.f32.mrb[0].mxu0
        %1126 = vdwg.mxu0
        %v1131 = vrot.slane %v1080, 7
        %v1132 = vrot.slane %v1082, 7
        %v1133 = vrot.slane %v1121, 7
        %v1134 = vrot.slane %v1123, 7
        %v1139 = vadd.f32 %v769, %v1131
        %v1140 = vadd.f32 %v770, %v1132
        %v1141 = vadd.f32 %v771, %v1133
        %v1142 = vadd.f32 %v772, %v1134
        %v1143 = vxor.u32 %v1139, 2147483648
        %v1144 = vxor.u32 %v1140, 2147483648
        %v1145 = vmul.f32 %v1143, 1.442695
        %v1146 = vpow.pop %v1145
        %v1147 = vmul.f32 %v1144, 1.442695
        %v1148 = vpow.pop %v1147
        %v1149 = vadd.f32 %v1146, 1.0
        %v1150 = vadd.f32 %v1148, 1.0
        %v1151 = vrcp.pop %v1149
        %v1152 = vmul.f32 1.0, %v1151
        %v1153 = vrcp.pop %v1150
        %v1154 = vmul.f32 1.0, %v1153
        %v1155 = vtanh.pop %v1141
        %v1156 = vxor.u32 %v1142, 2147483648
        %v1157 = vmul.f32 %v1156, 1.442695
        %v1158 = vpow.pop %v1157
        %v1159 = vadd.f32 %v1158, 1.0
        %v1160 = vrcp.pop %v1159
        %v1161 = vmul.f32 1.0, %v1160
        %v1163 = vrot.slane %v1041, 7
        %v1165 = vmul.f32 %v1154, %v1163
        %v1166 = vmul.f32 %v1152, %v1155
        %v1167 = vadd.f32 %v1165, %v1166
        %v1168 = vtanh.pop %v1167
        %v1169 = vmul.f32 %v1161, %v1168
        %v1170 = vpack.c.bf16 %v1169, %v1169
        %v1172 = vshrl.u32 %v1170, 16
        %1175 = vmatprep.subr.bf16.mxu0 %v871
        %1176 = vmatpush1.bf16.msra.mxu0 %v870
        %1177 = vmatprep.subr.bf16.mxu0 %v875
        %1178 = vmatpush1.bf16.msra.mxu0 %v874
        %1179 = vmatprep.subr.bf16.mxu0 %v879
        %1180 = vmatpush1.bf16.msra.mxu0 %v878
        %1181 = vmatprep.subr.bf16.mxu0 %v883
        %1182 = vmatpush1.bf16.msra.mxu0 %v882
        %1183 = vmatprep.subr.bf16.mxu0 %v887
        %1184 = vmatpush1.bf16.msra.mxu0 %v886
        %1185 = vmatprep.subr.bf16.mxu0 %v891
        %1186 = vmatpush1.bf16.msra.mxu0 %v890
        %1187 = vmatprep.subr.bf16.mxu0 %v895
        %1188 = vmatpush1.bf16.msra.mxu0 %v894
        %1189 = vmatprep.subr.bf16.mxu0 %v899
        %1190 = vmatpush1.bf16.msra.mxu0 %v898
        %1191 = vmatprep.subr.bf16.mxu0 0
        %1192 = vmatpush1.bf16.msra.mxu0 0
        %1193 = vmatprep.subr.bf16.mxu0 0
        %1194 = vmatpush1.bf16.msra.mxu0 0
        %1195 = vmatprep.subr.bf16.mxu0 0
        %1196 = vmatpush1.bf16.msra.mxu0 0
        %1197 = vmatprep.subr.bf16.mxu0 0
        %1198 = vmatpush1.bf16.msra.mxu0 0
        %1199 = vmatprep.subr.bf16.mxu0 0
        %1200 = vmatpush1.bf16.msra.mxu0 0
        %1201 = vmatprep.subr.bf16.mxu0 0
        %1202 = vmatpush1.bf16.msra.mxu0 0
        %1203 = vmatprep.subr.bf16.mxu0 0
        %1204 = vmatpush1.bf16.msra.mxu0 0
        %1205 = vmatprep.subr.bf16.mxu0 0
        %1206 = vmatpush1.bf16.msra.mxu0 0
        %1207 = vmatprep.mubr.bf16.mxu0 0
        %1208 = vmatmul.mubr.bf16.gmra.mrb[0].mxu0 %v1172
        %v1209 = vpop.f32.mrb[0].mxu0
        %v1210 = vadd.f32 0.0, %v1209
        %v1211 = vpop.f32.mrb[0].mxu0
        %v1212 = vadd.f32 0.0, %v1211
        %v1213 = vpop.f32.mrb[0].mxu0
        %v1214 = vpop.f32.mrb[0].mxu0
        %1215 = vdwg.mxu0
        %1216 = vmatprep.subr.bf16.mxu0 %v873
        %1217 = vmatpush1.bf16.msra.mxu0 %v872
        %1218 = vmatprep.subr.bf16.mxu0 %v877
        %1219 = vmatpush1.bf16.msra.mxu0 %v876
        %1220 = vmatprep.subr.bf16.mxu0 %v881
        %1221 = vmatpush1.bf16.msra.mxu0 %v880
        %1222 = vmatprep.subr.bf16.mxu0 %v885
        %1223 = vmatpush1.bf16.msra.mxu0 %v884
        %1224 = vmatprep.subr.bf16.mxu0 %v889
        %1225 = vmatpush1.bf16.msra.mxu0 %v888
        %1226 = vmatprep.subr.bf16.mxu0 %v893
        %1227 = vmatpush1.bf16.msra.mxu0 %v892
        %1228 = vmatprep.subr.bf16.mxu0 %v897
        %1229 = vmatpush1.bf16.msra.mxu0 %v896
        %1230 = vmatprep.subr.bf16.mxu0 %v901
        %1231 = vmatpush1.bf16.msra.mxu0 %v900
        %1232 = vmatprep.subr.bf16.mxu0 0
        %1233 = vmatpush1.bf16.msra.mxu0 0
        %1234 = vmatprep.subr.bf16.mxu0 0
        %1235 = vmatpush1.bf16.msra.mxu0 0
        %1236 = vmatprep.subr.bf16.mxu0 0
        %1237 = vmatpush1.bf16.msra.mxu0 0
        %1238 = vmatprep.subr.bf16.mxu0 0
        %1239 = vmatpush1.bf16.msra.mxu0 0
        %1240 = vmatprep.subr.bf16.mxu0 0
        %1241 = vmatpush1.bf16.msra.mxu0 0
        %1242 = vmatprep.subr.bf16.mxu0 0
        %1243 = vmatpush1.bf16.msra.mxu0 0
        %1244 = vmatprep.subr.bf16.mxu0 0
        %1245 = vmatpush1.bf16.msra.mxu0 0
        %1246 = vmatprep.subr.bf16.mxu0 0
        %1247 = vmatpush1.bf16.msra.mxu0 0
        %1248 = vmatprep.mubr.bf16.mxu0 0
        %1249 = vmatmul.mubr.bf16.gmra.mrb[0].mxu0 %v1172
        %v1250 = vpop.f32.mrb[0].mxu0
        %v1251 = vadd.f32 0.0, %v1250
        %v1252 = vpop.f32.mrb[0].mxu0
        %v1253 = vadd.f32 0.0, %v1252
        %v1254 = vpop.f32.mrb[0].mxu0
        %v1255 = vpop.f32.mrb[0].mxu0
        %1256 = vdwg.mxu0
        %v1261 = vrot.slane %v1210, 6
        %v1262 = vrot.slane %v1212, 6
        %v1263 = vrot.slane %v1251, 6
        %v1264 = vrot.slane %v1253, 6
        %v1269 = vadd.f32 %v769, %v1261
        %v1270 = vadd.f32 %v770, %v1262
        %v1271 = vadd.f32 %v771, %v1263
        %v1272 = vadd.f32 %v772, %v1264
        %v1273 = vxor.u32 %v1269, 2147483648
        %v1274 = vxor.u32 %v1270, 2147483648
        %v1275 = vmul.f32 %v1273, 1.442695
        %v1276 = vpow.pop %v1275
        %v1277 = vmul.f32 %v1274, 1.442695
        %v1278 = vpow.pop %v1277
        %v1279 = vadd.f32 %v1276, 1.0
        %v1280 = vadd.f32 %v1278, 1.0
        %v1281 = vrcp.pop %v1279
        %v1282 = vmul.f32 1.0, %v1281
        %v1283 = vrcp.pop %v1280
        %v1284 = vmul.f32 1.0, %v1283
        %v1285 = vtanh.pop %v1271
        %v1286 = vxor.u32 %v1272, 2147483648
        %v1287 = vmul.f32 %v1286, 1.442695
        %v1288 = vpow.pop %v1287
        %v1289 = vadd.f32 %v1288, 1.0
        %v1290 = vrcp.pop %v1289
        %v1291 = vmul.f32 1.0, %v1290
        %v1293 = vrot.slane %v1167, 7
        %v1295 = vmul.f32 %v1284, %v1293
        %v1296 = vmul.f32 %v1282, %v1285
        %v1297 = vadd.f32 %v1295, %v1296
        %v1298 = vtanh.pop %v1297
        %v1299 = vmul.f32 %v1291, %v1298
        %v1300 = vpack.c.bf16 %v1299, %v1299
        %v1302 = vrot.slane %v1300, 1
        %1304 = vmatprep.subr.bf16.mxu0 %v871
        %1305 = vmatpush1.bf16.msra.mxu0 %v870
        %1306 = vmatprep.subr.bf16.mxu0 %v875
        %1307 = vmatpush1.bf16.msra.mxu0 %v874
        %1308 = vmatprep.subr.bf16.mxu0 %v879
        %1309 = vmatpush1.bf16.msra.mxu0 %v878
        %1310 = vmatprep.subr.bf16.mxu0 %v883
        %1311 = vmatpush1.bf16.msra.mxu0 %v882
        %1312 = vmatprep.subr.bf16.mxu0 %v887
        %1313 = vmatpush1.bf16.msra.mxu0 %v886
        %1314 = vmatprep.subr.bf16.mxu0 %v891
        %1315 = vmatpush1.bf16.msra.mxu0 %v890
        %1316 = vmatprep.subr.bf16.mxu0 %v895
        %1317 = vmatpush1.bf16.msra.mxu0 %v894
        %1318 = vmatprep.subr.bf16.mxu0 %v899
        %1319 = vmatpush1.bf16.msra.mxu0 %v898
        %1320 = vmatprep.subr.bf16.mxu0 0
        %1321 = vmatpush1.bf16.msra.mxu0 0
        %1322 = vmatprep.subr.bf16.mxu0 0
        %1323 = vmatpush1.bf16.msra.mxu0 0
        %1324 = vmatprep.subr.bf16.mxu0 0
        %1325 = vmatpush1.bf16.msra.mxu0 0
        %1326 = vmatprep.subr.bf16.mxu0 0
        %1327 = vmatpush1.bf16.msra.mxu0 0
        %1328 = vmatprep.subr.bf16.mxu0 0
        %1329 = vmatpush1.bf16.msra.mxu0 0
        %1330 = vmatprep.subr.bf16.mxu0 0
        %1331 = vmatpush1.bf16.msra.mxu0 0
        %1332 = vmatprep.subr.bf16.mxu0 0
        %1333 = vmatpush1.bf16.msra.mxu0 0
        %1334 = vmatprep.subr.bf16.mxu0 0
        %1335 = vmatpush1.bf16.msra.mxu0 0
        %1336 = vmatprep.mubr.bf16.mxu0 0
        %1337 = vmatmul.mubr.bf16.gmra.mrb[0].mxu0 %v1302
        %v1338 = vpop.f32.mrb[0].mxu0
        %v1339 = vadd.f32 0.0, %v1338
        %v1340 = vpop.f32.mrb[0].mxu0
        %v1341 = vadd.f32 0.0, %v1340
        %v1342 = vpop.f32.mrb[0].mxu0
        %v1343 = vpop.f32.mrb[0].mxu0
        %1344 = vdwg.mxu0
        %1345 = vmatprep.subr.bf16.mxu0 %v873
        %1346 = vmatpush1.bf16.msra.mxu0 %v872
        %1347 = vmatprep.subr.bf16.mxu0 %v877
        %1348 = vmatpush1.bf16.msra.mxu0 %v876
        %1349 = vmatprep.subr.bf16.mxu0 %v881
        %1350 = vmatpush1.bf16.msra.mxu0 %v880
        %1351 = vmatprep.subr.bf16.mxu0 %v885
        %1352 = vmatpush1.bf16.msra.mxu0 %v884
        %1353 = vmatprep.subr.bf16.mxu0 %v889
        %1354 = vmatpush1.bf16.msra.mxu0 %v888
        %1355 = vmatprep.subr.bf16.mxu0 %v893
        %1356 = vmatpush1.bf16.msra.mxu0 %v892
        %1357 = vmatprep.subr.bf16.mxu0 %v897
        %1358 = vmatpush1.bf16.msra.mxu0 %v896
        %1359 = vmatprep.subr.bf16.mxu0 %v901
        %1360 = vmatpush1.bf16.msra.mxu0 %v900
        %1361 = vmatprep.subr.bf16.mxu0 0
        %1362 = vmatpush1.bf16.msra.mxu0 0
        %1363 = vmatprep.subr.bf16.mxu0 0
        %1364 = vmatpush1.bf16.msra.mxu0 0
        %1365 = vmatprep.subr.bf16.mxu0 0
        %1366 = vmatpush1.bf16.msra.mxu0 0
        %1367 = vmatprep.subr.bf16.mxu0 0
        %1368 = vmatpush1.bf16.msra.mxu0 0
        %1369 = vmatprep.subr.bf16.mxu0 0
        %1370 = vmatpush1.bf16.msra.mxu0 0
        %1371 = vmatprep.subr.bf16.mxu0 0
        %1372 = vmatpush1.bf16.msra.mxu0 0
        %1373 = vmatprep.subr.bf16.mxu0 0
        %1374 = vmatpush1.bf16.msra.mxu0 0
        %1375 = vmatprep.subr.bf16.mxu0 0
        %1376 = vmatpush1.bf16.msra.mxu0 0
        %1377 = vmatprep.mubr.bf16.mxu0 0
        %1378 = vmatmul.mubr.bf16.gmra.mrb[0].mxu0 %v1302
        %v1379 = vpop.f32.mrb[0].mxu0
        %v1380 = vadd.f32 0.0, %v1379
        %v1381 = vpop.f32.mrb[0].mxu0
        %v1382 = vadd.f32 0.0, %v1381
        %v1383 = vpop.f32.mrb[0].mxu0
        %v1384 = vpop.f32.mrb[0].mxu0
        %1385 = vdwg.mxu0
        %v1390 = vrot.slane %v1339, 5
        %v1391 = vrot.slane %v1341, 5
        %v1392 = vrot.slane %v1380, 5
        %v1393 = vrot.slane %v1382, 5
        %v1398 = vadd.f32 %v769, %v1390
        %v1399 = vadd.f32 %v770, %v1391
        %v1400 = vadd.f32 %v771, %v1392
        %v1401 = vadd.f32 %v772, %v1393
        %v1402 = vxor.u32 %v1398, 2147483648
        %v1403 = vxor.u32 %v1399, 2147483648
        %v1404 = vmul.f32 %v1402, 1.442695
        %v1405 = vpow.pop %v1404
        %v1406 = vmul.f32 %v1403, 1.442695
        %v1407 = vpow.pop %v1406
        %v1408 = vadd.f32 %v1405, 1.0
        %v1409 = vadd.f32 %v1407, 1.0
        %v1410 = vrcp.pop %v1408
        %v1411 = vmul.f32 1.0, %v1410
        %v1412 = vrcp.pop %v1409
        %v1413 = vmul.f32 1.0, %v1412
        %v1414 = vtanh.pop %v1400
        %v1415 = vxor.u32 %v1401, 2147483648
        %v1416 = vmul.f32 %v1415, 1.442695
        %v1417 = vpow.pop %v1416
        %v1418 = vadd.f32 %v1417, 1.0
        %v1419 = vrcp.pop %v1418
        %v1420 = vmul.f32 1.0, %v1419
        %v1422 = vrot.slane %v1297, 7
        %v1424 = vmul.f32 %v1413, %v1422
        %v1425 = vmul.f32 %v1411, %v1414
        %v1426 = vadd.f32 %v1424, %v1425
        %v1427 = vtanh.pop %v1426
        %v1428 = vmul.f32 %v1420, %v1427
        %v1429 = vpack.c.bf16 %v1428, %v1428
        %v1431 = vshrl.u32 %v1429, 16
        %v1433 = vrot.slane %v1431, 1
        %1435 = vmatprep.subr.bf16.mxu0 %v871
        %1436 = vmatpush1.bf16.msra.mxu0 %v870
        %1437 = vmatprep.subr.bf16.mxu0 %v875
        %1438 = vmatpush1.bf16.msra.mxu0 %v874
        %1439 = vmatprep.subr.bf16.mxu0 %v879
        %1440 = vmatpush1.bf16.msra.mxu0 %v878
        %1441 = vmatprep.subr.bf16.mxu0 %v883
        %1442 = vmatpush1.bf16.msra.mxu0 %v882
        %1443 = vmatprep.subr.bf16.mxu0 %v887
        %1444 = vmatpush1.bf16.msra.mxu0 %v886
        %1445 = vmatprep.subr.bf16.mxu0 %v891
        %1446 = vmatpush1.bf16.msra.mxu0 %v890
        %1447 = vmatprep.subr.bf16.mxu0 %v895
        %1448 = vmatpush1.bf16.msra.mxu0 %v894
        %1449 = vmatprep.subr.bf16.mxu0 %v899
        %1450 = vmatpush1.bf16.msra.mxu0 %v898
        %1451 = vmatprep.subr.bf16.mxu0 0
        %1452 = vmatpush1.bf16.msra.mxu0 0
        %1453 = vmatprep.subr.bf16.mxu0 0
        %1454 = vmatpush1.bf16.msra.mxu0 0
        %1455 = vmatprep.subr.bf16.mxu0 0
        %1456 = vmatpush1.bf16.msra.mxu0 0
        %1457 = vmatprep.subr.bf16.mxu0 0
        %1458 = vmatpush1.bf16.msra.mxu0 0
        %1459 = vmatprep.subr.bf16.mxu0 0
        %1460 = vmatpush1.bf16.msra.mxu0 0
        %1461 = vmatprep.subr.bf16.mxu0 0
        %1462 = vmatpush1.bf16.msra.mxu0 0
        %1463 = vmatprep.subr.bf16.mxu0 0
        %1464 = vmatpush1.bf16.msra.mxu0 0
        %1465 = vmatprep.subr.bf16.mxu0 0
        %1466 = vmatpush1.bf16.msra.mxu0 0
        %1467 = vmatprep.mubr.bf16.mxu0 0
        %1468 = vmatmul.mubr.bf16.gmra.mrb[0].mxu0 %v1433
        %v1469 = vpop.f32.mrb[0].mxu0
        %v1470 = vadd.f32 0.0, %v1469
        %v1471 = vpop.f32.mrb[0].mxu0
        %v1472 = vadd.f32 0.0, %v1471
        %v1473 = vpop.f32.mrb[0].mxu0
        %v1474 = vpop.f32.mrb[0].mxu0
        %1475 = vdwg.mxu0
        %1476 = vmatprep.subr.bf16.mxu0 %v873
        %1477 = vmatpush1.bf16.msra.mxu0 %v872
        %1478 = vmatprep.subr.bf16.mxu0 %v877
        %1479 = vmatpush1.bf16.msra.mxu0 %v876
        %1480 = vmatprep.subr.bf16.mxu0 %v881
        %1481 = vmatpush1.bf16.msra.mxu0 %v880
        %1482 = vmatprep.subr.bf16.mxu0 %v885
        %1483 = vmatpush1.bf16.msra.mxu0 %v884
        %1484 = vmatprep.subr.bf16.mxu0 %v889
        %1485 = vmatpush1.bf16.msra.mxu0 %v888
        %1486 = vmatprep.subr.bf16.mxu0 %v893
        %1487 = vmatpush1.bf16.msra.mxu0 %v892
        %1488 = vmatprep.subr.bf16.mxu0 %v897
        %1489 = vmatpush1.bf16.msra.mxu0 %v896
        %1490 = vmatprep.subr.bf16.mxu0 %v901
        %1491 = vmatpush1.bf16.msra.mxu0 %v900
        %1492 = vmatprep.subr.bf16.mxu0 0
        %1493 = vmatpush1.bf16.msra.mxu0 0
        %1494 = vmatprep.subr.bf16.mxu0 0
        %1495 = vmatpush1.bf16.msra.mxu0 0
        %1496 = vmatprep.subr.bf16.mxu0 0
        %1497 = vmatpush1.bf16.msra.mxu0 0
        %1498 = vmatprep.subr.bf16.mxu0 0
        %1499 = vmatpush1.bf16.msra.mxu0 0
        %1500 = vmatprep.subr.bf16.mxu0 0
        %1501 = vmatpush1.bf16.msra.mxu0 0
        %1502 = vmatprep.subr.bf16.mxu0 0
        %1503 = vmatpush1.bf16.msra.mxu0 0
        %1504 = vmatprep.subr.bf16.mxu0 0
        %1505 = vmatpush1.bf16.msra.mxu0 0
        %1506 = vmatprep.subr.bf16.mxu0 0
        %1507 = vmatpush1.bf16.msra.mxu0 0
        %1508 = vmatprep.mubr.bf16.mxu0 0
        %1509 = vmatmul.mubr.bf16.gmra.mrb[0].mxu0 %v1433
        %v1510 = vpop.f32.mrb[0].mxu0
        %v1511 = vadd.f32 0.0, %v1510
        %v1512 = vpop.f32.mrb[0].mxu0
        %v1513 = vadd.f32 0.0, %v1512
        %v1514 = vpop.f32.mrb[0].mxu0
        %v1515 = vpop.f32.mrb[0].mxu0
        %1516 = vdwg.mxu0
        %v1521 = vrot.slane %v1470, 4
        %v1522 = vrot.slane %v1472, 4
        %v1523 = vrot.slane %v1511, 4
        %v1524 = vrot.slane %v1513, 4
        %v1529 = vadd.f32 %v769, %v1521
        %v1530 = vadd.f32 %v770, %v1522
        %v1531 = vadd.f32 %v771, %v1523
        %v1532 = vadd.f32 %v772, %v1524
        %v1533 = vxor.u32 %v1529, 2147483648
        %v1534 = vxor.u32 %v1530, 2147483648
        %v1535 = vmul.f32 %v1533, 1.442695
        %v1536 = vpow.pop %v1535
        %v1537 = vmul.f32 %v1534, 1.442695
        %v1538 = vpow.pop %v1537
        %v1539 = vadd.f32 %v1536, 1.0
        %v1540 = vadd.f32 %v1538, 1.0
        %v1541 = vrcp.pop %v1539
        %v1542 = vmul.f32 1.0, %v1541
        %v1543 = vrcp.pop %v1540
        %v1544 = vmul.f32 1.0, %v1543
        %v1545 = vtanh.pop %v1531
        %v1546 = vxor.u32 %v1532, 2147483648
        %v1547 = vmul.f32 %v1546, 1.442695
        %v1548 = vpow.pop %v1547
        %v1549 = vadd.f32 %v1548, 1.0
        %v1550 = vrcp.pop %v1549
        %v1551 = vmul.f32 1.0, %v1550
        %v1553 = vrot.slane %v1426, 7
        %v1555 = vmul.f32 %v1544, %v1553
        %v1556 = vmul.f32 %v1542, %v1545
        %v1557 = vadd.f32 %v1555, %v1556
        %v1558 = vtanh.pop %v1557
        %v1559 = vmul.f32 %v1551, %v1558
        %v1560 = vpack.c.bf16 %v1559, %v1559
        %v1562 = vrot.slane %v1560, 2
        %1564 = vmatprep.subr.bf16.mxu0 %v871
        %1565 = vmatpush1.bf16.msra.mxu0 %v870
        %1566 = vmatprep.subr.bf16.mxu0 %v875
        %1567 = vmatpush1.bf16.msra.mxu0 %v874
        %1568 = vmatprep.subr.bf16.mxu0 %v879
        %1569 = vmatpush1.bf16.msra.mxu0 %v878
        %1570 = vmatprep.subr.bf16.mxu0 %v883
        %1571 = vmatpush1.bf16.msra.mxu0 %v882
        %1572 = vmatprep.subr.bf16.mxu0 %v887
        %1573 = vmatpush1.bf16.msra.mxu0 %v886
        %1574 = vmatprep.subr.bf16.mxu0 %v891
        %1575 = vmatpush1.bf16.msra.mxu0 %v890
        %1576 = vmatprep.subr.bf16.mxu0 %v895
        %1577 = vmatpush1.bf16.msra.mxu0 %v894
        %1578 = vmatprep.subr.bf16.mxu0 %v899
        %1579 = vmatpush1.bf16.msra.mxu0 %v898
        %1580 = vmatprep.subr.bf16.mxu0 0
        %1581 = vmatpush1.bf16.msra.mxu0 0
        %1582 = vmatprep.subr.bf16.mxu0 0
        %1583 = vmatpush1.bf16.msra.mxu0 0
        %1584 = vmatprep.subr.bf16.mxu0 0
        %1585 = vmatpush1.bf16.msra.mxu0 0
        %1586 = vmatprep.subr.bf16.mxu0 0
        %1587 = vmatpush1.bf16.msra.mxu0 0
        %1588 = vmatprep.subr.bf16.mxu0 0
        %1589 = vmatpush1.bf16.msra.mxu0 0
        %1590 = vmatprep.subr.bf16.mxu0 0
        %1591 = vmatpush1.bf16.msra.mxu0 0
        %1592 = vmatprep.subr.bf16.mxu0 0
        %1593 = vmatpush1.bf16.msra.mxu0 0
        %1594 = vmatprep.subr.bf16.mxu0 0
        %1595 = vmatpush1.bf16.msra.mxu0 0
        %1596 = vmatprep.mubr.bf16.mxu0 0
        %1597 = vmatmul.mubr.bf16.gmra.mrb[0].mxu0 %v1562
        %v1598 = vpop.f32.mrb[0].mxu0
        %v1599 = vadd.f32 0.0, %v1598
        %v1600 = vpop.f32.mrb[0].mxu0
        %v1601 = vadd.f32 0.0, %v1600
        %v1602 = vpop.f32.mrb[0].mxu0
        %v1603 = vpop.f32.mrb[0].mxu0
        %1604 = vdwg.mxu0
        %1605 = vmatprep.subr.bf16.mxu0 %v873
        %1606 = vmatpush1.bf16.msra.mxu0 %v872
        %1607 = vmatprep.subr.bf16.mxu0 %v877
        %1608 = vmatpush1.bf16.msra.mxu0 %v876
        %1609 = vmatprep.subr.bf16.mxu0 %v881
        %1610 = vmatpush1.bf16.msra.mxu0 %v880
        %1611 = vmatprep.subr.bf16.mxu0 %v885
        %1612 = vmatpush1.bf16.msra.mxu0 %v884
        %1613 = vmatprep.subr.bf16.mxu0 %v889
        %1614 = vmatpush1.bf16.msra.mxu0 %v888
        %1615 = vmatprep.subr.bf16.mxu0 %v893
        %1616 = vmatpush1.bf16.msra.mxu0 %v892
        %1617 = vmatprep.subr.bf16.mxu0 %v897
        %1618 = vmatpush1.bf16.msra.mxu0 %v896
        %1619 = vmatprep.subr.bf16.mxu0 %v901
        %1620 = vmatpush1.bf16.msra.mxu0 %v900
        %1621 = vmatprep.subr.bf16.mxu0 0
        %1622 = vmatpush1.bf16.msra.mxu0 0
        %1623 = vmatprep.subr.bf16.mxu0 0
        %1624 = vmatpush1.bf16.msra.mxu0 0
        %1625 = vmatprep.subr.bf16.mxu0 0
        %1626 = vmatpush1.bf16.msra.mxu0 0
        %1627 = vmatprep.subr.bf16.mxu0 0
        %1628 = vmatpush1.bf16.msra.mxu0 0
        %1629 = vmatprep.subr.bf16.mxu0 0
        %1630 = vmatpush1.bf16.msra.mxu0 0
        %1631 = vmatprep.subr.bf16.mxu0 0
        %1632 = vmatpush1.bf16.msra.mxu0 0
        %1633 = vmatprep.subr.bf16.mxu0 0
        %1634 = vmatpush1.bf16.msra.mxu0 0
        %1635 = vmatprep.subr.bf16.mxu0 0
        %1636 = vmatpush1.bf16.msra.mxu0 0
        %1637 = vmatprep.mubr.bf16.mxu0 0
        %1638 = vmatmul.mubr.bf16.gmra.mrb[0].mxu0 %v1562
        %v1639 = vpop.f32.mrb[0].mxu0
        %v1640 = vadd.f32 0.0, %v1639
        %v1641 = vpop.f32.mrb[0].mxu0
        %v1642 = vadd.f32 0.0, %v1641
        %v1643 = vpop.f32.mrb[0].mxu0
        %v1644 = vpop.f32.mrb[0].mxu0
        %1645 = vdwg.mxu0
        %v1650 = vrot.slane %v1599, 3
        %v1651 = vrot.slane %v1601, 3
        %v1652 = vrot.slane %v1640, 3
        %v1653 = vrot.slane %v1642, 3
        %v1658 = vadd.f32 %v769, %v1650
        %v1659 = vadd.f32 %v770, %v1651
        %v1660 = vadd.f32 %v771, %v1652
        %v1661 = vadd.f32 %v772, %v1653
        %v1662 = vxor.u32 %v1658, 2147483648
        %v1663 = vxor.u32 %v1659, 2147483648
        %v1664 = vmul.f32 %v1662, 1.442695
        %v1665 = vpow.pop %v1664
        %v1666 = vmul.f32 %v1663, 1.442695
        %v1667 = vpow.pop %v1666
        %v1668 = vadd.f32 %v1665, 1.0
        %v1669 = vadd.f32 %v1667, 1.0
        %v1670 = vrcp.pop %v1668
        %v1671 = vmul.f32 1.0, %v1670
        %v1672 = vrcp.pop %v1669
        %v1673 = vmul.f32 1.0, %v1672
        %v1674 = vtanh.pop %v1660
        %v1675 = vxor.u32 %v1661, 2147483648
        %v1676 = vmul.f32 %v1675, 1.442695
        %v1677 = vpow.pop %v1676
        %v1678 = vadd.f32 %v1677, 1.0
        %v1679 = vrcp.pop %v1678
        %v1680 = vmul.f32 1.0, %v1679
        %v1682 = vrot.slane %v1557, 7
        %v1684 = vmul.f32 %v1673, %v1682
        %v1685 = vmul.f32 %v1671, %v1674
        %v1686 = vadd.f32 %v1684, %v1685
        %v1687 = vtanh.pop %v1686
        %v1688 = vmul.f32 %v1680, %v1687
        %v1689 = vpack.c.bf16 %v1688, %v1688
        %v1691 = vshrl.u32 %v1689, 16
        %v1693 = vrot.slane %v1691, 2
        %1695 = vmatprep.subr.bf16.mxu0 %v871
        %1696 = vmatpush1.bf16.msra.mxu0 %v870
        %1697 = vmatprep.subr.bf16.mxu0 %v875
        %1698 = vmatpush1.bf16.msra.mxu0 %v874
        %1699 = vmatprep.subr.bf16.mxu0 %v879
        %1700 = vmatpush1.bf16.msra.mxu0 %v878
        %1701 = vmatprep.subr.bf16.mxu0 %v883
        %1702 = vmatpush1.bf16.msra.mxu0 %v882
        %1703 = vmatprep.subr.bf16.mxu0 %v887
        %1704 = vmatpush1.bf16.msra.mxu0 %v886
        %1705 = vmatprep.subr.bf16.mxu0 %v891
        %1706 = vmatpush1.bf16.msra.mxu0 %v890
        %1707 = vmatprep.subr.bf16.mxu0 %v895
        %1708 = vmatpush1.bf16.msra.mxu0 %v894
        %1709 = vmatprep.subr.bf16.mxu0 %v899
        %1710 = vmatpush1.bf16.msra.mxu0 %v898
        %1711 = vmatprep.subr.bf16.mxu0 0
        %1712 = vmatpush1.bf16.msra.mxu0 0
        %1713 = vmatprep.subr.bf16.mxu0 0
        %1714 = vmatpush1.bf16.msra.mxu0 0
        %1715 = vmatprep.subr.bf16.mxu0 0
        %1716 = vmatpush1.bf16.msra.mxu0 0
        %1717 = vmatprep.subr.bf16.mxu0 0
        %1718 = vmatpush1.bf16.msra.mxu0 0
        %1719 = vmatprep.subr.bf16.mxu0 0
        %1720 = vmatpush1.bf16.msra.mxu0 0
        %1721 = vmatprep.subr.bf16.mxu0 0
        %1722 = vmatpush1.bf16.msra.mxu0 0
        %1723 = vmatprep.subr.bf16.mxu0 0
        %1724 = vmatpush1.bf16.msra.mxu0 0
        %1725 = vmatprep.subr.bf16.mxu0 0
        %1726 = vmatpush1.bf16.msra.mxu0 0
        %1727 = vmatprep.mubr.bf16.mxu0 0
        %1728 = vmatmul.mubr.bf16.gmra.mrb[0].mxu0 %v1693
        %v1729 = vpop.f32.mrb[0].mxu0
        %v1730 = vadd.f32 0.0, %v1729
        %v1731 = vpop.f32.mrb[0].mxu0
        %v1732 = vadd.f32 0.0, %v1731
        %v1733 = vpop.f32.mrb[0].mxu0
        %v1734 = vpop.f32.mrb[0].mxu0
        %1735 = vdwg.mxu0
        %1736 = vmatprep.subr.bf16.mxu0 %v873
        %1737 = vmatpush1.bf16.msra.mxu0 %v872
        %1738 = vmatprep.subr.bf16.mxu0 %v877
        %1739 = vmatpush1.bf16.msra.mxu0 %v876
        %1740 = vmatprep.subr.bf16.mxu0 %v881
        %1741 = vmatpush1.bf16.msra.mxu0 %v880
        %1742 = vmatprep.subr.bf16.mxu0 %v885
        %1743 = vmatpush1.bf16.msra.mxu0 %v884
        %1744 = vmatprep.subr.bf16.mxu0 %v889
        %1745 = vmatpush1.bf16.msra.mxu0 %v888
        %1746 = vmatprep.subr.bf16.mxu0 %v893
        %1747 = vmatpush1.bf16.msra.mxu0 %v892
        %1748 = vmatprep.subr.bf16.mxu0 %v897
        %1749 = vmatpush1.bf16.msra.mxu0 %v896
        %1750 = vmatprep.subr.bf16.mxu0 %v901
        %1751 = vmatpush1.bf16.msra.mxu0 %v900
        %1752 = vmatprep.subr.bf16.mxu0 0
        %1753 = vmatpush1.bf16.msra.mxu0 0
        %1754 = vmatprep.subr.bf16.mxu0 0
        %1755 = vmatpush1.bf16.msra.mxu0 0
        %1756 = vmatprep.subr.bf16.mxu0 0
        %1757 = vmatpush1.bf16.msra.mxu0 0
        %1758 = vmatprep.subr.bf16.mxu0 0
        %1759 = vmatpush1.bf16.msra.mxu0 0
        %1760 = vmatprep.subr.bf16.mxu0 0
        %1761 = vmatpush1.bf16.msra.mxu0 0
        %1762 = vmatprep.subr.bf16.mxu0 0
        %1763 = vmatpush1.bf16.msra.mxu0 0
        %1764 = vmatprep.subr.bf16.mxu0 0
        %1765 = vmatpush1.bf16.msra.mxu0 0
        %1766 = vmatprep.subr.bf16.mxu0 0
        %1767 = vmatpush1.bf16.msra.mxu0 0
        %1768 = vmatprep.mubr.bf16.mxu0 0
        %1769 = vmatmul.mubr.bf16.gmra.mrb[0].mxu0 %v1693
        %v1770 = vpop.f32.mrb[0].mxu0
        %v1771 = vadd.f32 0.0, %v1770
        %v1772 = vpop.f32.mrb[0].mxu0
        %v1773 = vadd.f32 0.0, %v1772
        %v1774 = vpop.f32.mrb[0].mxu0
        %v1775 = vpop.f32.mrb[0].mxu0
        %1776 = vdwg.mxu0
        %v1781 = vrot.slane %v1730, 2
        %v1782 = vrot.slane %v1732, 2
        %v1783 = vrot.slane %v1771, 2
        %v1784 = vrot.slane %v1773, 2
        %v1789 = vadd.f32 %v769, %v1781
        %v1790 = vadd.f32 %v770, %v1782
        %v1791 = vadd.f32 %v771, %v1783
        %v1792 = vadd.f32 %v772, %v1784
        %v1793 = vxor.u32 %v1789, 2147483648
        %v1794 = vxor.u32 %v1790, 2147483648
        %v1795 = vmul.f32 %v1793, 1.442695
        %v1796 = vpow.pop %v1795
        %v1797 = vmul.f32 %v1794, 1.442695
        %v1798 = vpow.pop %v1797
        %v1799 = vadd.f32 %v1796, 1.0
        %v1800 = vadd.f32 %v1798, 1.0
        %v1801 = vrcp.pop %v1799
        %v1802 = vmul.f32 1.0, %v1801
        %v1803 = vrcp.pop %v1800
        %v1804 = vmul.f32 1.0, %v1803
        %v1805 = vtanh.pop %v1791
        %v1806 = vxor.u32 %v1792, 2147483648
        %v1807 = vmul.f32 %v1806, 1.442695
        %v1808 = vpow.pop %v1807
        %v1809 = vadd.f32 %v1808, 1.0
        %v1810 = vrcp.pop %v1809
        %v1811 = vmul.f32 1.0, %v1810
        %v1813 = vrot.slane %v1686, 7
        %v1815 = vmul.f32 %v1804, %v1813
        %v1816 = vmul.f32 %v1802, %v1805
        %v1817 = vadd.f32 %v1815, %v1816
        %v1818 = vtanh.pop %v1817
        %v1819 = vmul.f32 %v1811, %v1818
        %v1820 = vpack.c.bf16 %v1819, %v1819
        %v1822 = vrot.slane %v1820, 3
        %1824 = vmatprep.subr.bf16.mxu0 %v871
        %1825 = vmatpush1.bf16.msra.mxu0 %v870
        %1826 = vmatprep.subr.bf16.mxu0 %v875
        %1827 = vmatpush1.bf16.msra.mxu0 %v874
        %1828 = vmatprep.subr.bf16.mxu0 %v879
        %1829 = vmatpush1.bf16.msra.mxu0 %v878
        %1830 = vmatprep.subr.bf16.mxu0 %v883
        %1831 = vmatpush1.bf16.msra.mxu0 %v882
        %1832 = vmatprep.subr.bf16.mxu0 %v887
        %1833 = vmatpush1.bf16.msra.mxu0 %v886
        %1834 = vmatprep.subr.bf16.mxu0 %v891
        %1835 = vmatpush1.bf16.msra.mxu0 %v890
        %1836 = vmatprep.subr.bf16.mxu0 %v895
        %1837 = vmatpush1.bf16.msra.mxu0 %v894
        %1838 = vmatprep.subr.bf16.mxu0 %v899
        %1839 = vmatpush1.bf16.msra.mxu0 %v898
        %1840 = vmatprep.subr.bf16.mxu0 0
        %1841 = vmatpush1.bf16.msra.mxu0 0
        %1842 = vmatprep.subr.bf16.mxu0 0
        %1843 = vmatpush1.bf16.msra.mxu0 0
        %1844 = vmatprep.subr.bf16.mxu0 0
        %1845 = vmatpush1.bf16.msra.mxu0 0
        %1846 = vmatprep.subr.bf16.mxu0 0
        %1847 = vmatpush1.bf16.msra.mxu0 0
        %1848 = vmatprep.subr.bf16.mxu0 0
        %1849 = vmatpush1.bf16.msra.mxu0 0
        %1850 = vmatprep.subr.bf16.mxu0 0
        %1851 = vmatpush1.bf16.msra.mxu0 0
        %1852 = vmatprep.subr.bf16.mxu0 0
        %1853 = vmatpush1.bf16.msra.mxu0 0
        %1854 = vmatprep.subr.bf16.mxu0 0
        %1855 = vmatpush1.bf16.msra.mxu0 0
        %1856 = vmatprep.mubr.bf16.mxu0 0
        %1857 = vmatmul.mubr.bf16.gmra.mrb[0].mxu0 %v1822
        %v1858 = vpop.f32.mrb[0].mxu0
        %v1859 = vadd.f32 0.0, %v1858
        %v1860 = vpop.f32.mrb[0].mxu0
        %v1861 = vadd.f32 0.0, %v1860
        %v1862 = vpop.f32.mrb[0].mxu0
        %v1863 = vpop.f32.mrb[0].mxu0
        %1864 = vdwg.mxu0
        %1865 = vmatprep.subr.bf16.mxu0 %v873
        %1866 = vmatpush1.bf16.msra.mxu0 %v872
        %1867 = vmatprep.subr.bf16.mxu0 %v877
        %1868 = vmatpush1.bf16.msra.mxu0 %v876
        %1869 = vmatprep.subr.bf16.mxu0 %v881
        %1870 = vmatpush1.bf16.msra.mxu0 %v880
        %1871 = vmatprep.subr.bf16.mxu0 %v885
        %1872 = vmatpush1.bf16.msra.mxu0 %v884
        %1873 = vmatprep.subr.bf16.mxu0 %v889
        %1874 = vmatpush1.bf16.msra.mxu0 %v888
        %1875 = vmatprep.subr.bf16.mxu0 %v893
        %1876 = vmatpush1.bf16.msra.mxu0 %v892
        %1877 = vmatprep.subr.bf16.mxu0 %v897
        %1878 = vmatpush1.bf16.msra.mxu0 %v896
        %1879 = vmatprep.subr.bf16.mxu0 %v901
        %1880 = vmatpush1.bf16.msra.mxu0 %v900
        %1881 = vmatprep.subr.bf16.mxu0 0
        %1882 = vmatpush1.bf16.msra.mxu0 0
        %1883 = vmatprep.subr.bf16.mxu0 0
        %1884 = vmatpush1.bf16.msra.mxu0 0
        %1885 = vmatprep.subr.bf16.mxu0 0
        %1886 = vmatpush1.bf16.msra.mxu0 0
        %1887 = vmatprep.subr.bf16.mxu0 0
        %1888 = vmatpush1.bf16.msra.mxu0 0
        %1889 = vmatprep.subr.bf16.mxu0 0
        %1890 = vmatpush1.bf16.msra.mxu0 0
        %1891 = vmatprep.subr.bf16.mxu0 0
        %1892 = vmatpush1.bf16.msra.mxu0 0
        %1893 = vmatprep.subr.bf16.mxu0 0
        %1894 = vmatpush1.bf16.msra.mxu0 0
        %1895 = vmatprep.subr.bf16.mxu0 0
        %1896 = vmatpush1.bf16.msra.mxu0 0
        %1897 = vmatprep.mubr.bf16.mxu0 0
        %1898 = vmatmul.mubr.bf16.gmra.mrb[0].mxu0 %v1822
        %v1899 = vpop.f32.mrb[0].mxu0
        %v1900 = vadd.f32 0.0, %v1899
        %v1901 = vpop.f32.mrb[0].mxu0
        %v1902 = vadd.f32 0.0, %v1901
        %v1903 = vpop.f32.mrb[0].mxu0
        %v1904 = vpop.f32.mrb[0].mxu0
        %1905 = vdwg.mxu0
        %v1910 = vrot.slane %v1859, 1
        %v1911 = vrot.slane %v1861, 1
        %v1912 = vrot.slane %v1900, 1
        %v1913 = vrot.slane %v1902, 1
        %v1918 = vadd.f32 %v769, %v1910
        %v1919 = vadd.f32 %v770, %v1911
        %v1920 = vadd.f32 %v771, %v1912
        %v1921 = vadd.f32 %v772, %v1913
        %v1922 = vxor.u32 %v1918, 2147483648
        %v1923 = vxor.u32 %v1919, 2147483648
        %v1924 = vmul.f32 %v1922, 1.442695
        %v1925 = vpow.pop %v1924
        %v1926 = vmul.f32 %v1923, 1.442695
        %v1927 = vpow.pop %v1926
        %v1928 = vadd.f32 %v1925, 1.0
        %v1929 = vadd.f32 %v1927, 1.0
        %v1930 = vrcp.pop %v1928
        %v1931 = vmul.f32 1.0, %v1930
        %v1932 = vrcp.pop %v1929
        %v1933 = vmul.f32 1.0, %v1932
        %v1934 = vtanh.pop %v1920
        %v1935 = vxor.u32 %v1921, 2147483648
        %v1936 = vmul.f32 %v1935, 1.442695
        %v1937 = vpow.pop %v1936
        %v1938 = vadd.f32 %v1937, 1.0
        %v1939 = vrcp.pop %v1938
        %v1940 = vmul.f32 1.0, %v1939
        %v1942 = vrot.slane %v1817, 7
        %v1944 = vmul.f32 %v1933, %v1942
        %v1945 = vmul.f32 %v1931, %v1934
        %v1946 = vadd.f32 %v1944, %v1945
        %v1947 = vtanh.pop %v1946
        %v1948 = vmul.f32 %v1940, %v1947
        %vm1949 = vcmask 1040384
        %v1950 = vsel %vm1949, %v1043, %v1169
        %vm1951 = vcmask 1041408
        %v1952 = vsel %vm1951, %v1950, %v1299
        %vm1953 = vcmask 1042432
        %v1954 = vsel %vm1953, %v1952, %v1428
        %vm1955 = vcmask 1043456
        %v1956 = vsel %vm1955, %v1954, %v1559
        %vm1957 = vcmask 1044480
        %v1958 = vsel %vm1957, %v1956, %v1688
        %vm1959 = vcmask 1045504
        %v1960 = vsel %vm1959, %v1958, %v1819
        %vm1961 = vcmask 1046528
        %v1962 = vsel %vm1961, %v1960, %v1948
        %1963 = vst [vmem:[#allocation2] sm:$0xff] %v1962
        %1964 = vst [vmem:[%s406 - $0x7] sm:$0x80] %v1948
        %1965 = vst [vmem:[%s412 - $0x7] sm:$0x80] %v1946
        %p1966 = scmp.eq.s32.totalorder %s28, 1
        // Predicated region
        $region61: #{tpu_custom_call.1} parent=43 // pred_check
          %p1967 = pneg %p1966
        $region62: #{tpu_custom_call.1} parent=43 // pred_check_branch
          %1969 = sbr.rel (%p1967) target = $region64
        $region63: #{tpu_custom_call.1} parent=43 // pred_region
          %v1970 = vld [vmem:[#allocation2] sm:$0xff]
          %1971 = vst [vmem:[#allocation10] sm:$0xff] %v1970
        $region64: #{tpu_custom_call.1} parent=43 // pred_fallthru
          _
        %s1972 = sand.u32 %s28, 1
        %s1973 = scalar_lea.sflag [#allocation12], %s1972
        %s1974 = sand.u32 %s208, 1
        %s1975 = scalar_lea.vmem [#allocation11], %s1974
        %s1976 = sand.u32 %s28, 1
        %s1977 = scalar_lea.sflag [#allocation12], %s1976
        %s1978 = sand.u32 %s234, 1
        %s1979 = scalar_lea.vmem [#allocation13], %s1978
        // Predicated region
        $region65: #{tpu_custom_call.1} parent=43 // pred_check
          %p1980 = pneg %p192
        $region66: #{tpu_custom_call.1} parent=43 // pred_check_branch
          %1982 = sbr.rel (%p1980) target = $region68
        $region67: #{tpu_custom_call.1} parent=43 // pred_region
          %s1984 = ssub.s32 128, 128
          %1985 = vsyncadd [#allocation6], %s1984
          %s1987 = sshll.u32 [#allocation10], 4
          %s1988 = int_to_ptr.vmem [resolvable:$true] %s1987
          %1990 = dma.vmem_to_hbm [thread:$0]  %s1988, 128, %s6, [#allocation6]
        $region68: #{tpu_custom_call.1} parent=43 // pred_fallthru
          _
        // Predicated region
        $region69: #{tpu_custom_call.1} parent=43 // pred_check
          %p1991 = pneg %p218
        $region70: #{tpu_custom_call.1} parent=43 // pred_check_branch
          %1993 = sbr.rel (%p1991) target = $region72
        $region71: #{tpu_custom_call.1} parent=43 // pred_region
          %s1995 = ssub.s32 16, 16
          %1996 = vsyncadd %s1973, %s1995
          %s1997 = smul.addr %s28, 16
          %s1998 = scalar_lea.hbm %s7, %s1997
          %s2000 = sshll.u32 %s1975, 4
          %s2001 = int_to_ptr.vmem [resolvable:$true] %s2000
          %2003 = dma.vmem_to_hbm [thread:$0]  %s2001, 16, %s1998, %s1973
        $region72: #{tpu_custom_call.1} parent=43 // pred_fallthru
          _
        // Predicated region
        $region73: #{tpu_custom_call.1} parent=43 // pred_check
          %p2004 = pneg %p244
        $region74: #{tpu_custom_call.1} parent=43 // pred_check_branch
          %2006 = sbr.rel (%p2004) target = $region76
        $region75: #{tpu_custom_call.1} parent=43 // pred_region
          %s2008 = ssub.s32 16, 16
          %2009 = vsyncadd %s1977, %s2008
          %s2010 = smul.addr %s28, 16
          %s2011 = scalar_lea.hbm %s8, %s2010
          %s2013 = sshll.u32 %s1979, 4
          %s2014 = int_to_ptr.vmem [resolvable:$true] %s2013
          %2016 = dma.vmem_to_hbm [thread:$0]  %s2014, 16, %s2011, %s1977
        $region76: #{tpu_custom_call.1} parent=43 // pred_fallthru
          _
        // Predicated region
        $region77: #{tpu_custom_call.1} parent=43 // pred_check
          %p2017 = pneg %p192
        $region78: #{tpu_custom_call.1} parent=43 // pred_check_branch
          %2019 = sbr.rel (%p2017) target = $region80
        $region79: #{tpu_custom_call.1} parent=43 // pred_region
          %2020 = dma.done [#allocation6], 128
        $region80: #{tpu_custom_call.1} parent=43 // pred_fallthru
          _
      $region44: #{tpu_custom_call.1} parent=5 // pred_fallthru
        _
      %p2021 = scmp.le.s32.totalorder 2, %s23
      // Predicated region
      $region81: #{tpu_custom_call.1} parent=5 // pred_check
        %p2022 = pneg %p2021
      $region82: #{tpu_custom_call.1} parent=5 // pred_check_branch
        %2024 = sbr.rel (%p2022) target = $region84
      $region83: #{tpu_custom_call.1} parent=5 // pred_region
        %s2025 = ssub.s32 %s23, 2
        // Predicated region
        $region85: #{tpu_custom_call.1} parent=83 // pred_check
          %p2026 = pneg %p224
        $region86: #{tpu_custom_call.1} parent=83 // pred_check_branch
          %2028 = sbr.rel (%p2026) target = $region88
        $region87: #{tpu_custom_call.1} parent=83 // pred_region
          %s2029 = sand.u32 %s29, 1
          %s2030 = scalar_lea.sflag [#allocation12], %s2029
          %s2031 = sand.u32 %s209, 1
          %s2032 = scalar_lea.vmem [#allocation11], %s2031
          %2033 = dma.done %s2030, 16
        $region88: #{tpu_custom_call.1} parent=83 // pred_fallthru
          _
        // Predicated region
        $region89: #{tpu_custom_call.1} parent=83 // pred_check
          %p2034 = pneg %p250
        $region90: #{tpu_custom_call.1} parent=83 // pred_check_branch
          %2036 = sbr.rel (%p2034) target = $region92
        $region91: #{tpu_custom_call.1} parent=83 // pred_region
          %s2037 = sand.u32 %s29, 1
          %s2038 = scalar_lea.sflag [#allocation12], %s2037
          %s2039 = sand.u32 %s235, 1
          %s2040 = scalar_lea.vmem [#allocation13], %s2039
          %2041 = dma.done %s2038, 16
        $region92: #{tpu_custom_call.1} parent=83 // pred_fallthru
          _
      $region84: #{tpu_custom_call.1} parent=5 // pred_fallthru
        _
    $region6: #{tpu_custom_call.1} parent=1 // loop_footer
      %s27 = sadd.s32 1, %s23
    $region7: #{tpu_custom_call.1} parent=1 // loop_footer_branch
      %22 = sbr.rel target = $region3
    $region8: #{tpu_custom_call.1} parent=1 // loop_exit
      _
    %2042 = vsyncpa [#allocation5], 1
    %s2043 = scalar_lea.sflag [#allocation5], 1
    %2044 = vsyncpa %s2043, 1
    %2045 = vsyncpa [#allocation8], 1
    %s2046 = scalar_lea.sflag [#allocation8], 1
    %2047 = vsyncpa %s2046, 1
    %2048 = vsyncpa [#allocation6], 1
    %s2049 = scalar_lea.sflag [#allocation6], 1
    %2050 = vsyncpa %s2049, 1
    %2051 = vsyncpa [#allocation12], 1
    %s2052 = scalar_lea.sflag [#allocation12], 1
    %2053 = vsyncpa %s2052, 1

</llo_original>
